<compile_context>
chip_gen: v5e
topology: v5e:2x2
jax: 0.10.0
libtpu: 0.0.40
codegen_flags: <defaults>
</compile_context>

<pallas_src>
import math

import jax
import jax.numpy as jnp
from jax.experimental import pallas as pl
from jax.experimental.pallas import tpu as pltpu


def dien_kernel(
    # per-batch-tile activations
    user_ref,      # (TB, Du)
    item_ref,      # (TB, H)
    hist_ref,      # (L, TB, H)   time-major history embeddings
    len_ref,       # (1, TB)      int32 history lengths
    # fused GRU weights
    wi_ref,        # (H, 3H)      [W_ir | W_iz | W_in]   (in, out) layout
    wh_ref,        # (H, 3H)      [W_hr | W_hz | W_hn]
    bi_ref,        # (1, 3H)      [b_ir+b_hr | b_iz+b_hz | b_in]
    bhn_ref,       # (1, H)       b_hn (cannot be folded: n uses r*(W_hn h + b_hn))
    # MLP weights (first layer split over the concat inputs, BN scale folded in)
    w1u_ref, w1i_ref, w1r_ref, b1_ref,
    w2_ref, b2_ref, w3_ref, b3_ref,
    # output
    out_ref,       # (TB, 1)
    # scratch
    gi_scr,        # (L, TB, 3H)  precomputed input-gate projections
    seq_scr,       # (L, TB, H)   GRU hidden state for every timestep
):
    L, TB, H = seq_scr.shape

    # ---- 1) Input-to-hidden projections for ALL timesteps, off the serial
    #         chain: fused (TB,H) @ (H,3H) per step, biases pre-folded. -------
    @pl.loop(0, L)
    def _(t):
        gi_scr[t] = (
            jnp.dot(hist_ref[t], wi_ref[...], preferred_element_type=jnp.float32)
            + bi_ref[...]
        )

    # ---- 2) GRU recurrence: a single fused h @ [W_hr|W_hz|W_hn] per step. ---
    def gru_step(t, h_prev):
        gi = gi_scr[t]                                           # (TB, 3H)
        gh = jnp.dot(h_prev, wh_ref[...],
                     preferred_element_type=jnp.float32)         # (TB, 3H)
        r = jax.nn.sigmoid(gi[:, 0:H] + gh[:, 0:H])
        z = jax.nn.sigmoid(gi[:, H:2 * H] + gh[:, H:2 * H])
        n = jnp.tanh(gi[:, 2 * H:3 * H] + r * (gh[:, 2 * H:3 * H] + bhn_ref[...]))
        h_new = (1.0 - z) * n + z * h_prev
        seq_scr[t] = h_new
        return h_new

    h0 = jnp.zeros((TB, H), jnp.float32)
    if L <= 32:
        # Full trace-time unroll: cross-step scheduler visibility for short L.
        h = h0
        for t in range(L):
            h = gru_step(t, h)
    else:
        jax.lax.fori_loop(0, L, gru_step, h0, unroll=2)

    # ---- 3) HistAttProd: masked dot-product softmax attention over states. --
    seq = seq_scr[...]                                     # (L, TB, H)
    item = item_ref[...]                                   # (TB, H)
    scores = jnp.sum(seq * item[None, :, :], axis=-1)      # (L, TB)

    lens = jnp.maximum(len_ref[...], 1)                    # module clamps len >= 1
    pos = jax.lax.broadcasted_iota(jnp.int32, (L, TB), 0)
    mask = pos < lens                                      # (L, TB)

    scores = jnp.where(mask, scores, jnp.float32(-1e30))
    m = jnp.max(scores, axis=0, keepdims=True)             # (1, TB)
    e = jnp.exp(scores - m)                                # masked entries underflow to 0
    s = jnp.sum(e, axis=0, keepdims=True)                  # (1, TB)
    w = e / s                                              # (L, TB)
    user_rep = jnp.sum(w[:, :, None] * seq, axis=0)        # (TB, H)

    # ---- 4) MLP head (concat realized as split first-layer weights; BN(eval)
    #         scale folded into w/b offline; dropout is identity in eval). ----
    h1 = jnp.dot(user_ref[...], w1u_ref[...], preferred_element_type=jnp.float32)
    h1 = h1 + jnp.dot(item, w1i_ref[...], preferred_element_type=jnp.float32)
    h1 = h1 + jnp.dot(user_rep, w1r_ref[...], preferred_element_type=jnp.float32)
    h1 = jnp.maximum(h1 + b1_ref[...], 0.0)
    h2 = jnp.dot(h1, w2_ref[...], preferred_element_type=jnp.float32) + b2_ref[...]
    h2 = jnp.maximum(h2, 0.0)
    logit = jnp.dot(h2, w3_ref[...], preferred_element_type=jnp.float32) + b3_ref[...]
    out_ref[...] = jax.nn.sigmoid(logit)                   # (TB, 1)


def init_params(key, vocab_size, embed_dim, user_nf, item_nf, hidden_dims):
    H = item_nf * embed_dim
    Du = user_nf * embed_dim
    keys = jax.random.split(key, 32)
    ki = iter(range(32))

    def w(shape, scale=0.1):
        return jax.random.normal(keys[next(ki)], shape, jnp.float32) * scale

    p = {"embedding": w((vocab_size, embed_dim))}
    # GRU weights stored as (in_features, out_features), gate order r, z, n.
    for name in ["w_ir", "w_iz", "w_in", "w_hr", "w_hz", "w_hn"]:
        p[name] = w((H, H))
    for name in ["b_ir", "b_iz", "b_in", "b_hr", "b_hz", "b_hn"]:
        p[name] = w((1, H), scale=0.05)
    h1d, h2d = hidden_dims
    p["w1_user"] = w((Du, h1d))
    p["w1_item"] = w((H, h1d))
    p["w1_rep"] = w((H, h1d))
    p["b1"] = w((1, h1d), scale=0.05)
    p["w2"] = w((h1d, h2d))
    p["b2"] = w((1, h2d), scale=0.05)
    p["w3"] = w((h2d, 1))
    p["b3"] = w((1, 1), scale=0.05)
    return p


def _fuse_params(params):
    # BatchNorm1d eval with default running stats (mean=0, var=1, affine id)
    # == multiply the Linear output (incl. bias) by 1/sqrt(1+eps).
    bn_scale = 1.0 / jnp.sqrt(jnp.float32(1.0 + 1e-5))
    wi = jnp.concatenate([params["w_ir"], params["w_iz"], params["w_in"]], axis=1)
    wh = jnp.concatenate([params["w_hr"], params["w_hz"], params["w_hn"]], axis=1)
    bi = jnp.concatenate(
        [params["b_ir"] + params["b_hr"],
         params["b_iz"] + params["b_hz"],
         params["b_in"]], axis=1)
    return dict(
        wi=wi, wh=wh, bi=bi, bhn=params["b_hn"],
        w1u=params["w1_user"] * bn_scale,
        w1i=params["w1_item"] * bn_scale,
        w1r=params["w1_rep"] * bn_scale,
        b1=params["b1"] * bn_scale,
        w2=params["w2"] * bn_scale,
        b2=params["b2"] * bn_scale,
        w3=params["w3"], b3=params["b3"],
    )


@jax.jit
def dien_forward(params, x_user, x_item, user_hist, hist_len):
    emb = params["embedding"]
    B = x_user.shape[0]
    L = user_hist.shape[1]

    user_emb = jnp.take(emb, x_user, axis=0).reshape(B, -1)          # (B, Du)
    item_emb = jnp.take(emb, x_item, axis=0).reshape(B, -1)          # (B, H)
    hist_emb = jnp.take(emb, user_hist, axis=0).reshape(B, L, -1)    # (B, L, H)
    hist_tm = jnp.transpose(hist_emb, (1, 0, 2))                     # (L, B, H)
    len2d = hist_len.astype(jnp.int32).reshape(1, B)                 # (1, B)

    Du = user_emb.shape[1]
    H = item_emb.shape[1]
    f = _fuse_params(params)
    h1d, h2d = f["w2"].shape

    # ---- batch tiling ------------------------------------------------------
    TB = B if B <= 128 else 128
    Bp = ((B + TB - 1) // TB) * TB
    if Bp != B:
        pad = Bp - B
        user_emb = jnp.pad(user_emb, ((0, pad), (0, 0)))
        item_emb = jnp.pad(item_emb, ((0, pad), (0, 0)))
        hist_tm = jnp.pad(hist_tm, ((0, 0), (0, pad), (0, 0)))
        len2d = jnp.pad(len2d, ((0, 0), (0, pad)), constant_values=1)
    grid = (Bp // TB,)

    batch2 = lambda i: (i, 0)
    const2 = lambda i: (0, 0)

    in_specs = [
        pl.BlockSpec((TB, Du), batch2),                  # user_emb
        pl.BlockSpec((TB, H), batch2),                   # item_emb
        pl.BlockSpec((L, TB, H), lambda i: (0, i, 0)),   # hist (time-major)
        pl.BlockSpec((1, TB), lambda i: (0, i)),         # hist_len
        pl.BlockSpec((H, 3 * H), const2),                # W_i fused
        pl.BlockSpec((H, 3 * H), const2),                # W_h fused
        pl.BlockSpec((1, 3 * H), const2),                # b_i fused
        pl.BlockSpec((1, H), const2),                    # b_hn
        pl.BlockSpec((Du, h1d), const2),                 # w1_user
        pl.BlockSpec((H, h1d), const2),                  # w1_item
        pl.BlockSpec((H, h1d), const2),                  # w1_rep
        pl.BlockSpec((1, h1d), const2),                  # b1
        pl.BlockSpec((h1d, h2d), const2),                # w2
        pl.BlockSpec((1, h2d), const2),                  # b2
        pl.BlockSpec((h2d, 1), const2),                  # w3
        pl.BlockSpec((1, 1), const2),                    # b3
    ]
    out_spec = pl.BlockSpec((TB, 1), batch2)

    inputs = [
        user_emb, item_emb, hist_tm, len2d,
        f["wi"], f["wh"], f["bi"], f["bhn"],
        f["w1u"], f["w1i"], f["w1r"], f["b1"],
        f["w2"], f["b2"], f["w3"], f["b3"],
    ]

    # Rough VMEM footprint (double-buffered blocks + scratch); raise the scoped
    # limit only if needed and stay comfortably under v7x's 64 MiB per core.
    block_elems = (
        TB * Du + TB * H + L * TB * H + TB            # batched activations
        + 2 * H * 3 * H + 3 * H + H                   # fused GRU weights
        + Du * h1d + 2 * H * h1d + h1d                # MLP layer 1
        + h1d * h2d + h2d + h2d + 1                   # MLP layers 2/3
        + TB                                          # output block
    )
    scratch_elems = L * TB * (3 * H) + L * TB * H
    vmem_est = (2 * block_elems + scratch_elems) * 4
    vmem_limit = None
    if vmem_est > 24 * 2**20:
        vmem_limit = min(int(1.5 * vmem_est), 60 * 2**20)

    out = pl.pallas_call(
        dien_kernel,
        out_shape=jax.ShapeDtypeStruct((Bp, 1), jnp.float32),
        grid=grid,
        in_specs=in_specs,
        out_specs=out_spec,
        scratch_shapes=[
            pltpu.VMEM((L, TB, 3 * H), jnp.float32),   # precomputed input gates
            pltpu.VMEM((L, TB, H), jnp.float32),       # GRU hidden sequence
        ],
        compiler_params=pltpu.CompilerParams(
            dimension_semantics=("parallel",),
            vmem_limit_bytes=vmem_limit,
        ),
    )(*inputs)
    return out[:B, 0]   # (B,)  == torch.sigmoid(out).squeeze(1)


if __name__ == "__main__":
    # Small config consistent with the module's forward.
    vocab_size = 100
    embed_dim = 8
    user_num_fields = 2
    item_num_fields = 2
    hidden_dims = [32, 16]
    B = 4          # batch
    L = 8          # max history length

    root = jax.random.PRNGKey(0)
    k_param, k_u, k_i, k_h, k_l = jax.random.split(root, 5)

    params = init_params(k_param, vocab_size, embed_dim,
                         user_num_fields, item_num_fields, hidden_dims)

    x_user = jax.random.randint(k_u, (B, user_num_fields), 0, vocab_size, jnp.int32)
    x_item = jax.random.randint(k_i, (B, item_num_fields), 0, vocab_size, jnp.int32)
    user_hist = jax.random.randint(k_h, (B, L, item_num_fields), 0, vocab_size, jnp.int32)
    hist_len = jax.random.randint(k_l, (B,), 0, L + 1, jnp.int32)  # zeros clamped to 1 (as in module)

    out = dien_forward(params, x_user, x_item, user_hist, hist_len)
    out = jax.block_until_ready(out)
    assert out.shape == (B,)
    assert bool(jnp.all(jnp.isfinite(out)))
    assert bool(jnp.all((out >= 0.0) & (out <= 1.0)))
    print("KERNEL_OK")
</pallas_src>

<mosaic_0001>
module attributes {stable_mosaic.version = 11 : i64} {
  func.func @dien_kernel(%arg0: i32, %arg1: memref<4x16xf32, #tpu.memory_space<vmem>>, %arg2: memref<4x16xf32, #tpu.memory_space<vmem>>, %arg3: memref<8x4x16xf32, #tpu.memory_space<vmem>>, %arg4: memref<1x4xi32, #tpu.memory_space<vmem>>, %arg5: memref<16x48xf32, #tpu.memory_space<vmem>>, %arg6: memref<16x48xf32, #tpu.memory_space<vmem>>, %arg7: memref<1x48xf32, #tpu.memory_space<vmem>>, %arg8: memref<1x16xf32, #tpu.memory_space<vmem>>, %arg9: memref<16x32xf32, #tpu.memory_space<vmem>>, %arg10: memref<16x32xf32, #tpu.memory_space<vmem>>, %arg11: memref<16x32xf32, #tpu.memory_space<vmem>>, %arg12: memref<1x32xf32, #tpu.memory_space<vmem>>, %arg13: memref<32x16xf32, #tpu.memory_space<vmem>>, %arg14: memref<1x16xf32, #tpu.memory_space<vmem>>, %arg15: memref<16x1xf32, #tpu.memory_space<vmem>>, %arg16: memref<1x1xf32, #tpu.memory_space<vmem>>, %arg17: memref<4x1xf32, #tpu.memory_space<vmem>>, %arg18: memref<8x4x48xf32, #tpu.memory_space<vmem>>, %arg19: memref<8x4x16xf32, #tpu.memory_space<vmem>>) attributes {dimension_semantics = [#tpu.dimension_semantics<parallel>], iteration_bounds = array<i64: 1>, scalar_prefetch = 0 : i64, scratch_operands = 2 : i64, tpu.core_type = #tpu.core_type<tc>, window_params = [{transform_indices = @transform_0, window_bounds = array<i64: 4, 16>}, {transform_indices = @transform_1, window_bounds = array<i64: 4, 16>}, {transform_indices = @transform_2, window_bounds = array<i64: 8, 4, 16>}, {transform_indices = @transform_3, window_bounds = array<i64: 1, 4>}, {pipeline_mode = #tpu.pipeline_mode<synchronous>, transform_indices = @transform_4, window_bounds = array<i64: 16, 48>}, {pipeline_mode = #tpu.pipeline_mode<synchronous>, transform_indices = @transform_5, window_bounds = array<i64: 16, 48>}, {pipeline_mode = #tpu.pipeline_mode<synchronous>, transform_indices = @transform_6, window_bounds = array<i64: 1, 48>}, {pipeline_mode = #tpu.pipeline_mode<synchronous>, transform_indices = @transform_7, window_bounds = array<i64: 1, 16>}, {pipeline_mode = #tpu.pipeline_mode<synchronous>, transform_indices = @transform_8, window_bounds = array<i64: 16, 32>}, {pipeline_mode = #tpu.pipeline_mode<synchronous>, transform_indices = @transform_9, window_bounds = array<i64: 16, 32>}, {pipeline_mode = #tpu.pipeline_mode<synchronous>, transform_indices = @transform_10, window_bounds = array<i64: 16, 32>}, {pipeline_mode = #tpu.pipeline_mode<synchronous>, transform_indices = @transform_11, window_bounds = array<i64: 1, 32>}, {pipeline_mode = #tpu.pipeline_mode<synchronous>, transform_indices = @transform_12, window_bounds = array<i64: 32, 16>}, {pipeline_mode = #tpu.pipeline_mode<synchronous>, transform_indices = @transform_13, window_bounds = array<i64: 1, 16>}, {pipeline_mode = #tpu.pipeline_mode<synchronous>, transform_indices = @transform_14, window_bounds = array<i64: 16, 1>}, {pipeline_mode = #tpu.pipeline_mode<synchronous>, transform_indices = @transform_15, window_bounds = array<i64: 1, 1>}, {transform_indices = @transform_16, window_bounds = array<i64: 4, 1>}]} {
    %c0_i32 = arith.constant 0 : i32
    %c8_i32 = arith.constant 8 : i32
    %0 = arith.addi %c0_i32, %c8_i32 : i32
    %c1_i32 = arith.constant 1 : i32
    scf.for %arg20 = %c0_i32 to %0 step %c1_i32  : i32 {
      %c1_i32_146 = arith.constant 1 : i32
      %349 = arith.muli %arg20, %c1_i32_146 : i32
      %c0_i32_147 = arith.constant 0 : i32
      %350 = arith.addi %c0_i32_147, %349 : i32
      %351 = arith.index_cast %350 : i32 to index
      %c0_148 = arith.constant 0 : index
      %c0_149 = arith.constant 0 : index
      %352 = vector.load %arg3[%351, %c0_148, %c0_149] : memref<8x4x16xf32, #tpu.memory_space<vmem>>, vector<1x4x16xf32>
      %353 = vector.shape_cast %352 : vector<1x4x16xf32> to vector<4x16xf32>
      %c0_150 = arith.constant 0 : index
      %c0_151 = arith.constant 0 : index
      %354 = vector.load %arg5[%c0_150, %c0_151] : memref<16x48xf32, #tpu.memory_space<vmem>>, vector<16x48xf32>
      %cst_152 = arith.constant dense<0.000000e+00> : vector<4x48xf32>
      %355 = tpu.matmul %353, %354, %cst_152 {dimension_numbers = #tpu.dot_dimension_numbers<[1], [0], [0], [1], [0, 0, 1, 1], [], []>} : vector<4x16xf32>, vector<16x48xf32>, vector<4x48xf32> -> vector<4x48xf32>
      %c0_153 = arith.constant 0 : index
      %c0_154 = arith.constant 0 : index
      %356 = vector.load %arg7[%c0_153, %c0_154] : memref<1x48xf32, #tpu.memory_space<vmem>>, vector<1x48xf32>
      %357 = vector.broadcast %356 : vector<1x48xf32> to vector<4x48xf32>
      %358 = arith.addf %355, %357 : vector<4x48xf32>
      %359 = arith.index_cast %350 : i32 to index
      %c0_155 = arith.constant 0 : index
      %c0_156 = arith.constant 0 : index
      %360 = vector.load %arg18[%359, %c0_155, %c0_156] : memref<8x4x48xf32, #tpu.memory_space<vmem>>, vector<1x4x48xf32>
      %361 = vector.shape_cast %360 : vector<1x4x48xf32> to vector<4x48xf32>
      %362 = vector.shape_cast %358 : vector<4x48xf32> to vector<1x4x48xf32>
      tpu.vector_store %arg18[%359, %c0_155, %c0_156], %362 {strides = array<i32>} : memref<8x4x48xf32, #tpu.memory_space<vmem>>, vector<1x4x48xf32>,
    }
    %c8_i32_0 = arith.constant 8 : i32
    %cst = arith.constant 0.000000e+00 : f32
    %1 = vector.broadcast %cst : f32 to vector<4x16xf32>
    %c0 = arith.constant 0 : index
    %c0_1 = arith.constant 0 : index
    %c0_2 = arith.constant 0 : index
    %2 = vector.load %arg18[%c0, %c0_1, %c0_2] : memref<8x4x48xf32, #tpu.memory_space<vmem>>, vector<1x4x48xf32>
    %3 = vector.shape_cast %2 : vector<1x4x48xf32> to vector<4x48xf32>
    %c0_3 = arith.constant 0 : index
    %c0_4 = arith.constant 0 : index
    %4 = vector.load %arg6[%c0_3, %c0_4] : memref<16x48xf32, #tpu.memory_space<vmem>>, vector<16x48xf32>
    %cst_5 = arith.constant dense<0.000000e+00> : vector<4x48xf32>
    %5 = tpu.matmul %1, %4, %cst_5 {dimension_numbers = #tpu.dot_dimension_numbers<[1], [0], [0], [1], [0, 0, 1, 1], [], []>} : vector<4x16xf32>, vector<16x48xf32>, vector<4x48xf32> -> vector<4x48xf32>
    %6 = vector.extract_strided_slice %3 {offsets = [0, 0], sizes = [4, 16], strides = [1, 1]} : vector<4x48xf32> to vector<4x16xf32>
    %7 = vector.extract_strided_slice %5 {offsets = [0, 0], sizes = [4, 16], strides = [1, 1]} : vector<4x48xf32> to vector<4x16xf32>
    %8 = arith.addf %6, %7 : vector<4x16xf32>
    %9 = arith.negf %8 : vector<4x16xf32>
    %10 = math.exp %9 : vector<4x16xf32>
    %cst_6 = arith.constant 1.000000e+00 : f32
    %11 = vector.broadcast %cst_6 : f32 to vector<4x16xf32>
    %12 = arith.addf %11, %10 : vector<4x16xf32>
    %13 = arith.divf %11, %12 : vector<4x16xf32>
    %14 = vector.extract_strided_slice %3 {offsets = [0, 16], sizes = [4, 16], strides = [1, 1]} : vector<4x48xf32> to vector<4x16xf32>
    %15 = vector.extract_strided_slice %5 {offsets = [0, 16], sizes = [4, 16], strides = [1, 1]} : vector<4x48xf32> to vector<4x16xf32>
    %16 = arith.addf %14, %15 : vector<4x16xf32>
    %17 = arith.negf %16 : vector<4x16xf32>
    %18 = math.exp %17 : vector<4x16xf32>
    %cst_7 = arith.constant 1.000000e+00 : f32
    %19 = vector.broadcast %cst_7 : f32 to vector<4x16xf32>
    %20 = arith.addf %19, %18 : vector<4x16xf32>
    %21 = arith.divf %19, %20 : vector<4x16xf32>
    %22 = vector.extract_strided_slice %3 {offsets = [0, 32], sizes = [4, 16], strides = [1, 1]} : vector<4x48xf32> to vector<4x16xf32>
    %23 = vector.extract_strided_slice %5 {offsets = [0, 32], sizes = [4, 16], strides = [1, 1]} : vector<4x48xf32> to vector<4x16xf32>
    %c0_8 = arith.constant 0 : index
    %c0_9 = arith.constant 0 : index
    %24 = vector.load %arg8[%c0_8, %c0_9] : memref<1x16xf32, #tpu.memory_space<vmem>>, vector<1x16xf32>
    %25 = vector.broadcast %24 : vector<1x16xf32> to vector<4x16xf32>
    %26 = arith.addf %23, %25 : vector<4x16xf32>
    %27 = arith.mulf %13, %26 : vector<4x16xf32>
    %28 = arith.addf %22, %27 : vector<4x16xf32>
    %29 = math.tanh %28 : vector<4x16xf32>
    %cst_10 = arith.constant 1.000000e+00 : f32
    %30 = vector.broadcast %cst_10 : f32 to vector<4x16xf32>
    %31 = arith.subf %30, %21 : vector<4x16xf32>
    %32 = arith.mulf %31, %29 : vector<4x16xf32>
    %33 = arith.mulf %21, %1 : vector<4x16xf32>
    %34 = arith.addf %32, %33 : vector<4x16xf32>
    %c0_11 = arith.constant 0 : index
    %c0_12 = arith.constant 0 : index
    %c0_13 = arith.constant 0 : index
    %35 = vector.load %arg19[%c0_11, %c0_12, %c0_13] : memref<8x4x16xf32, #tpu.memory_space<vmem>>, vector<1x4x16xf32>
    %36 = vector.shape_cast %35 : vector<1x4x16xf32> to vector<4x16xf32>
    %37 = vector.shape_cast %34 : vector<4x16xf32> to vector<1x4x16xf32>
    tpu.vector_store %arg19[%c0_11, %c0_12, %c0_13], %37 {strides = array<i32>} : memref<8x4x16xf32, #tpu.memory_space<vmem>>, vector<1x4x16xf32>,
    %c1 = arith.constant 1 : index
    %c0_14 = arith.constant 0 : index
    %c0_15 = arith.constant 0 : index
    %38 = vector.load %arg18[%c1, %c0_14, %c0_15] : memref<8x4x48xf32, #tpu.memory_space<vmem>>, vector<1x4x48xf32>
    %39 = vector.shape_cast %38 : vector<1x4x48xf32> to vector<4x48xf32>
    %c0_16 = arith.constant 0 : index
    %c0_17 = arith.constant 0 : index
    %40 = vector.load %arg6[%c0_16, %c0_17] : memref<16x48xf32, #tpu.memory_space<vmem>>, vector<16x48xf32>
    %cst_18 = arith.constant dense<0.000000e+00> : vector<4x48xf32>
    %41 = tpu.matmul %34, %40, %cst_18 {dimension_numbers = #tpu.dot_dimension_numbers<[1], [0], [0], [1], [0, 0, 1, 1], [], []>} : vector<4x16xf32>, vector<16x48xf32>, vector<4x48xf32> -> vector<4x48xf32>
    %42 = vector.extract_strided_slice %39 {offsets = [0, 0], sizes = [4, 16], strides = [1, 1]} : vector<4x48xf32> to vector<4x16xf32>
    %43 = vector.extract_strided_slice %41 {offsets = [0, 0], sizes = [4, 16], strides = [1, 1]} : vector<4x48xf32> to vector<4x16xf32>
    %44 = arith.addf %42, %43 : vector<4x16xf32>
    %45 = arith.negf %44 : vector<4x16xf32>
    %46 = math.exp %45 : vector<4x16xf32>
    %cst_19 = arith.constant 1.000000e+00 : f32
    %47 = vector.broadcast %cst_19 : f32 to vector<4x16xf32>
    %48 = arith.addf %47, %46 : vector<4x16xf32>
    %49 = arith.divf %47, %48 : vector<4x16xf32>
    %50 = vector.extract_strided_slice %39 {offsets = [0, 16], sizes = [4, 16], strides = [1, 1]} : vector<4x48xf32> to vector<4x16xf32>
    %51 = vector.extract_strided_slice %41 {offsets = [0, 16], sizes = [4, 16], strides = [1, 1]} : vector<4x48xf32> to vector<4x16xf32>
    %52 = arith.addf %50, %51 : vector<4x16xf32>
    %53 = arith.negf %52 : vector<4x16xf32>
    %54 = math.exp %53 : vector<4x16xf32>
    %cst_20 = arith.constant 1.000000e+00 : f32
    %55 = vector.broadcast %cst_20 : f32 to vector<4x16xf32>
    %56 = arith.addf %55, %54 : vector<4x16xf32>
    %57 = arith.divf %55, %56 : vector<4x16xf32>
    %58 = vector.extract_strided_slice %39 {offsets = [0, 32], sizes = [4, 16], strides = [1, 1]} : vector<4x48xf32> to vector<4x16xf32>
    %59 = vector.extract_strided_slice %41 {offsets = [0, 32], sizes = [4, 16], strides = [1, 1]} : vector<4x48xf32> to vector<4x16xf32>
    %c0_21 = arith.constant 0 : index
    %c0_22 = arith.constant 0 : index
    %60 = vector.load %arg8[%c0_21, %c0_22] : memref<1x16xf32, #tpu.memory_space<vmem>>, vector<1x16xf32>
    %61 = vector.broadcast %60 : vector<1x16xf32> to vector<4x16xf32>
    %62 = arith.addf %59, %61 : vector<4x16xf32>
    %63 = arith.mulf %49, %62 : vector<4x16xf32>
    %64 = arith.addf %58, %63 : vector<4x16xf32>
    %65 = math.tanh %64 : vector<4x16xf32>
    %cst_23 = arith.constant 1.000000e+00 : f32
    %66 = vector.broadcast %cst_23 : f32 to vector<4x16xf32>
    %67 = arith.subf %66, %57 : vector<4x16xf32>
    %68 = arith.mulf %67, %65 : vector<4x16xf32>
    %69 = arith.mulf %57, %34 : vector<4x16xf32>
    %70 = arith.addf %68, %69 : vector<4x16xf32>
    %c1_24 = arith.constant 1 : index
    %c0_25 = arith.constant 0 : index
    %c0_26 = arith.constant 0 : index
    %71 = vector.load %arg19[%c1_24, %c0_25, %c0_26] : memref<8x4x16xf32, #tpu.memory_space<vmem>>, vector<1x4x16xf32>
    %72 = vector.shape_cast %71 : vector<1x4x16xf32> to vector<4x16xf32>
    %73 = vector.shape_cast %70 : vector<4x16xf32> to vector<1x4x16xf32>
    tpu.vector_store %arg19[%c1_24, %c0_25, %c0_26], %73 {strides = array<i32>} : memref<8x4x16xf32, #tpu.memory_space<vmem>>, vector<1x4x16xf32>,
    %c2 = arith.constant 2 : index
    %c0_27 = arith.constant 0 : index
    %c0_28 = arith.constant 0 : index
    %74 = vector.load %arg18[%c2, %c0_27, %c0_28] : memref<8x4x48xf32, #tpu.memory_space<vmem>>, vector<1x4x48xf32>
    %75 = vector.shape_cast %74 : vector<1x4x48xf32> to vector<4x48xf32>
    %c0_29 = arith.constant 0 : index
    %c0_30 = arith.constant 0 : index
    %76 = vector.load %arg6[%c0_29, %c0_30] : memref<16x48xf32, #tpu.memory_space<vmem>>, vector<16x48xf32>
    %cst_31 = arith.constant dense<0.000000e+00> : vector<4x48xf32>
    %77 = tpu.matmul %70, %76, %cst_31 {dimension_numbers = #tpu.dot_dimension_numbers<[1], [0], [0], [1], [0, 0, 1, 1], [], []>} : vector<4x16xf32>, vector<16x48xf32>, vector<4x48xf32> -> vector<4x48xf32>
    %78 = vector.extract_strided_slice %75 {offsets = [0, 0], sizes = [4, 16], strides = [1, 1]} : vector<4x48xf32> to vector<4x16xf32>
    %79 = vector.extract_strided_slice %77 {offsets = [0, 0], sizes = [4, 16], strides = [1, 1]} : vector<4x48xf32> to vector<4x16xf32>
    %80 = arith.addf %78, %79 : vector<4x16xf32>
    %81 = arith.negf %80 : vector<4x16xf32>
    %82 = math.exp %81 : vector<4x16xf32>
    %cst_32 = arith.constant 1.000000e+00 : f32
    %83 = vector.broadcast %cst_32 : f32 to vector<4x16xf32>
    %84 = arith.addf %83, %82 : vector<4x16xf32>
    %85 = arith.divf %83, %84 : vector<4x16xf32>
    %86 = vector.extract_strided_slice %75 {offsets = [0, 16], sizes = [4, 16], strides = [1, 1]} : vector<4x48xf32> to vector<4x16xf32>
    %87 = vector.extract_strided_slice %77 {offsets = [0, 16], sizes = [4, 16], strides = [1, 1]} : vector<4x48xf32> to vector<4x16xf32>
    %88 = arith.addf %86, %87 : vector<4x16xf32>
    %89 = arith.negf %88 : vector<4x16xf32>
    %90 = math.exp %89 : vector<4x16xf32>
    %cst_33 = arith.constant 1.000000e+00 : f32
    %91 = vector.broadcast %cst_33 : f32 to vector<4x16xf32>
    %92 = arith.addf %91, %90 : vector<4x16xf32>
    %93 = arith.divf %91, %92 : vector<4x16xf32>
    %94 = vector.extract_strided_slice %75 {offsets = [0, 32], sizes = [4, 16], strides = [1, 1]} : vector<4x48xf32> to vector<4x16xf32>
    %95 = vector.extract_strided_slice %77 {offsets = [0, 32], sizes = [4, 16], strides = [1, 1]} : vector<4x48xf32> to vector<4x16xf32>
    %c0_34 = arith.constant 0 : index
    %c0_35 = arith.constant 0 : index
    %96 = vector.load %arg8[%c0_34, %c0_35] : memref<1x16xf32, #tpu.memory_space<vmem>>, vector<1x16xf32>
    %97 = vector.broadcast %96 : vector<1x16xf32> to vector<4x16xf32>
    %98 = arith.addf %95, %97 : vector<4x16xf32>
    %99 = arith.mulf %85, %98 : vector<4x16xf32>
    %100 = arith.addf %94, %99 : vector<4x16xf32>
    %101 = math.tanh %100 : vector<4x16xf32>
    %cst_36 = arith.constant 1.000000e+00 : f32
    %102 = vector.broadcast %cst_36 : f32 to vector<4x16xf32>
    %103 = arith.subf %102, %93 : vector<4x16xf32>
    %104 = arith.mulf %103, %101 : vector<4x16xf32>
    %105 = arith.mulf %93, %70 : vector<4x16xf32>
    %106 = arith.addf %104, %105 : vector<4x16xf32>
    %c2_37 = arith.constant 2 : index
    %c0_38 = arith.constant 0 : index
    %c0_39 = arith.constant 0 : index
    %107 = vector.load %arg19[%c2_37, %c0_38, %c0_39] : memref<8x4x16xf32, #tpu.memory_space<vmem>>, vector<1x4x16xf32>
    %108 = vector.shape_cast %107 : vector<1x4x16xf32> to vector<4x16xf32>
    %109 = vector.shape_cast %106 : vector<4x16xf32> to vector<1x4x16xf32>
    tpu.vector_store %arg19[%c2_37, %c0_38, %c0_39], %109 {strides = array<i32>} : memref<8x4x16xf32, #tpu.memory_space<vmem>>, vector<1x4x16xf32>,
    %c3 = arith.constant 3 : index
    %c0_40 = arith.constant 0 : index
    %c0_41 = arith.constant 0 : index
    %110 = vector.load %arg18[%c3, %c0_40, %c0_41] : memref<8x4x48xf32, #tpu.memory_space<vmem>>, vector<1x4x48xf32>
    %111 = vector.shape_cast %110 : vector<1x4x48xf32> to vector<4x48xf32>
    %c0_42 = arith.constant 0 : index
    %c0_43 = arith.constant 0 : index
    %112 = vector.load %arg6[%c0_42, %c0_43] : memref<16x48xf32, #tpu.memory_space<vmem>>, vector<16x48xf32>
    %cst_44 = arith.constant dense<0.000000e+00> : vector<4x48xf32>
    %113 = tpu.matmul %106, %112, %cst_44 {dimension_numbers = #tpu.dot_dimension_numbers<[1], [0], [0], [1], [0, 0, 1, 1], [], []>} : vector<4x16xf32>, vector<16x48xf32>, vector<4x48xf32> -> vector<4x48xf32>
    %114 = vector.extract_strided_slice %111 {offsets = [0, 0], sizes = [4, 16], strides = [1, 1]} : vector<4x48xf32> to vector<4x16xf32>
    %115 = vector.extract_strided_slice %113 {offsets = [0, 0], sizes = [4, 16], strides = [1, 1]} : vector<4x48xf32> to vector<4x16xf32>
    %116 = arith.addf %114, %115 : vector<4x16xf32>
    %117 = arith.negf %116 : vector<4x16xf32>
    %118 = math.exp %117 : vector<4x16xf32>
    %cst_45 = arith.constant 1.000000e+00 : f32
    %119 = vector.broadcast %cst_45 : f32 to vector<4x16xf32>
    %120 = arith.addf %119, %118 : vector<4x16xf32>
    %121 = arith.divf %119, %120 : vector<4x16xf32>
    %122 = vector.extract_strided_slice %111 {offsets = [0, 16], sizes = [4, 16], strides = [1, 1]} : vector<4x48xf32> to vector<4x16xf32>
    %123 = vector.extract_strided_slice %113 {offsets = [0, 16], sizes = [4, 16], strides = [1, 1]} : vector<4x48xf32> to vector<4x16xf32>
    %124 = arith.addf %122, %123 : vector<4x16xf32>
    %125 = arith.negf %124 : vector<4x16xf32>
    %126 = math.exp %125 : vector<4x16xf32>
    %cst_46 = arith.constant 1.000000e+00 : f32
    %127 = vector.broadcast %cst_46 : f32 to vector<4x16xf32>
    %128 = arith.addf %127, %126 : vector<4x16xf32>
    %129 = arith.divf %127, %128 : vector<4x16xf32>
    %130 = vector.extract_strided_slice %111 {offsets = [0, 32], sizes = [4, 16], strides = [1, 1]} : vector<4x48xf32> to vector<4x16xf32>
    %131 = vector.extract_strided_slice %113 {offsets = [0, 32], sizes = [4, 16], strides = [1, 1]} : vector<4x48xf32> to vector<4x16xf32>
    %c0_47 = arith.constant 0 : index
    %c0_48 = arith.constant 0 : index
    %132 = vector.load %arg8[%c0_47, %c0_48] : memref<1x16xf32, #tpu.memory_space<vmem>>, vector<1x16xf32>
    %133 = vector.broadcast %132 : vector<1x16xf32> to vector<4x16xf32>
    %134 = arith.addf %131, %133 : vector<4x16xf32>
    %135 = arith.mulf %121, %134 : vector<4x16xf32>
    %136 = arith.addf %130, %135 : vector<4x16xf32>
    %137 = math.tanh %136 : vector<4x16xf32>
    %cst_49 = arith.constant 1.000000e+00 : f32
    %138 = vector.broadcast %cst_49 : f32 to vector<4x16xf32>
    %139 = arith.subf %138, %129 : vector<4x16xf32>
    %140 = arith.mulf %139, %137 : vector<4x16xf32>
    %141 = arith.mulf %129, %106 : vector<4x16xf32>
    %142 = arith.addf %140, %141 : vector<4x16xf32>
    %c3_50 = arith.constant 3 : index
    %c0_51 = arith.constant 0 : index
    %c0_52 = arith.constant 0 : index
    %143 = vector.load %arg19[%c3_50, %c0_51, %c0_52] : memref<8x4x16xf32, #tpu.memory_space<vmem>>, vector<1x4x16xf32>
    %144 = vector.shape_cast %143 : vector<1x4x16xf32> to vector<4x16xf32>
    %145 = vector.shape_cast %142 : vector<4x16xf32> to vector<1x4x16xf32>
    tpu.vector_store %arg19[%c3_50, %c0_51, %c0_52], %145 {strides = array<i32>} : memref<8x4x16xf32, #tpu.memory_space<vmem>>, vector<1x4x16xf32>,
    %c4 = arith.constant 4 : index
    %c0_53 = arith.constant 0 : index
    %c0_54 = arith.constant 0 : index
    %146 = vector.load %arg18[%c4, %c0_53, %c0_54] : memref<8x4x48xf32, #tpu.memory_space<vmem>>, vector<1x4x48xf32>
    %147 = vector.shape_cast %146 : vector<1x4x48xf32> to vector<4x48xf32>
    %c0_55 = arith.constant 0 : index
    %c0_56 = arith.constant 0 : index
    %148 = vector.load %arg6[%c0_55, %c0_56] : memref<16x48xf32, #tpu.memory_space<vmem>>, vector<16x48xf32>
    %cst_57 = arith.constant dense<0.000000e+00> : vector<4x48xf32>
    %149 = tpu.matmul %142, %148, %cst_57 {dimension_numbers = #tpu.dot_dimension_numbers<[1], [0], [0], [1], [0, 0, 1, 1], [], []>} : vector<4x16xf32>, vector<16x48xf32>, vector<4x48xf32> -> vector<4x48xf32>
    %150 = vector.extract_strided_slice %147 {offsets = [0, 0], sizes = [4, 16], strides = [1, 1]} : vector<4x48xf32> to vector<4x16xf32>
    %151 = vector.extract_strided_slice %149 {offsets = [0, 0], sizes = [4, 16], strides = [1, 1]} : vector<4x48xf32> to vector<4x16xf32>
    %152 = arith.addf %150, %151 : vector<4x16xf32>
    %153 = arith.negf %152 : vector<4x16xf32>
    %154 = math.exp %153 : vector<4x16xf32>
    %cst_58 = arith.constant 1.000000e+00 : f32
    %155 = vector.broadcast %cst_58 : f32 to vector<4x16xf32>
    %156 = arith.addf %155, %154 : vector<4x16xf32>
    %157 = arith.divf %155, %156 : vector<4x16xf32>
    %158 = vector.extract_strided_slice %147 {offsets = [0, 16], sizes = [4, 16], strides = [1, 1]} : vector<4x48xf32> to vector<4x16xf32>
    %159 = vector.extract_strided_slice %149 {offsets = [0, 16], sizes = [4, 16], strides = [1, 1]} : vector<4x48xf32> to vector<4x16xf32>
    %160 = arith.addf %158, %159 : vector<4x16xf32>
    %161 = arith.negf %160 : vector<4x16xf32>
    %162 = math.exp %161 : vector<4x16xf32>
    %cst_59 = arith.constant 1.000000e+00 : f32
    %163 = vector.broadcast %cst_59 : f32 to vector<4x16xf32>
    %164 = arith.addf %163, %162 : vector<4x16xf32>
    %165 = arith.divf %163, %164 : vector<4x16xf32>
    %166 = vector.extract_strided_slice %147 {offsets = [0, 32], sizes = [4, 16], strides = [1, 1]} : vector<4x48xf32> to vector<4x16xf32>
    %167 = vector.extract_strided_slice %149 {offsets = [0, 32], sizes = [4, 16], strides = [1, 1]} : vector<4x48xf32> to vector<4x16xf32>
    %c0_60 = arith.constant 0 : index
    %c0_61 = arith.constant 0 : index
    %168 = vector.load %arg8[%c0_60, %c0_61] : memref<1x16xf32, #tpu.memory_space<vmem>>, vector<1x16xf32>
    %169 = vector.broadcast %168 : vector<1x16xf32> to vector<4x16xf32>
    %170 = arith.addf %167, %169 : vector<4x16xf32>
    %171 = arith.mulf %157, %170 : vector<4x16xf32>
    %172 = arith.addf %166, %171 : vector<4x16xf32>
    %173 = math.tanh %172 : vector<4x16xf32>
    %cst_62 = arith.constant 1.000000e+00 : f32
    %174 = vector.broadcast %cst_62 : f32 to vector<4x16xf32>
    %175 = arith.subf %174, %165 : vector<4x16xf32>
    %176 = arith.mulf %175, %173 : vector<4x16xf32>
    %177 = arith.mulf %165, %142 : vector<4x16xf32>
    %178 = arith.addf %176, %177 : vector<4x16xf32>
    %c4_63 = arith.constant 4 : index
    %c0_64 = arith.constant 0 : index
    %c0_65 = arith.constant 0 : index
    %179 = vector.load %arg19[%c4_63, %c0_64, %c0_65] : memref<8x4x16xf32, #tpu.memory_space<vmem>>, vector<1x4x16xf32>
    %180 = vector.shape_cast %179 : vector<1x4x16xf32> to vector<4x16xf32>
    %181 = vector.shape_cast %178 : vector<4x16xf32> to vector<1x4x16xf32>
    tpu.vector_store %arg19[%c4_63, %c0_64, %c0_65], %181 {strides = array<i32>} : memref<8x4x16xf32, #tpu.memory_space<vmem>>, vector<1x4x16xf32>,
    %c5 = arith.constant 5 : index
    %c0_66 = arith.constant 0 : index
    %c0_67 = arith.constant 0 : index
    %182 = vector.load %arg18[%c5, %c0_66, %c0_67] : memref<8x4x48xf32, #tpu.memory_space<vmem>>, vector<1x4x48xf32>
    %183 = vector.shape_cast %182 : vector<1x4x48xf32> to vector<4x48xf32>
    %c0_68 = arith.constant 0 : index
    %c0_69 = arith.constant 0 : index
    %184 = vector.load %arg6[%c0_68, %c0_69] : memref<16x48xf32, #tpu.memory_space<vmem>>, vector<16x48xf32>
    %cst_70 = arith.constant dense<0.000000e+00> : vector<4x48xf32>
    %185 = tpu.matmul %178, %184, %cst_70 {dimension_numbers = #tpu.dot_dimension_numbers<[1], [0], [0], [1], [0, 0, 1, 1], [], []>} : vector<4x16xf32>, vector<16x48xf32>, vector<4x48xf32> -> vector<4x48xf32>
    %186 = vector.extract_strided_slice %183 {offsets = [0, 0], sizes = [4, 16], strides = [1, 1]} : vector<4x48xf32> to vector<4x16xf32>
    %187 = vector.extract_strided_slice %185 {offsets = [0, 0], sizes = [4, 16], strides = [1, 1]} : vector<4x48xf32> to vector<4x16xf32>
    %188 = arith.addf %186, %187 : vector<4x16xf32>
    %189 = arith.negf %188 : vector<4x16xf32>
    %190 = math.exp %189 : vector<4x16xf32>
    %cst_71 = arith.constant 1.000000e+00 : f32
    %191 = vector.broadcast %cst_71 : f32 to vector<4x16xf32>
    %192 = arith.addf %191, %190 : vector<4x16xf32>
    %193 = arith.divf %191, %192 : vector<4x16xf32>
    %194 = vector.extract_strided_slice %183 {offsets = [0, 16], sizes = [4, 16], strides = [1, 1]} : vector<4x48xf32> to vector<4x16xf32>
    %195 = vector.extract_strided_slice %185 {offsets = [0, 16], sizes = [4, 16], strides = [1, 1]} : vector<4x48xf32> to vector<4x16xf32>
    %196 = arith.addf %194, %195 : vector<4x16xf32>
    %197 = arith.negf %196 : vector<4x16xf32>
    %198 = math.exp %197 : vector<4x16xf32>
    %cst_72 = arith.constant 1.000000e+00 : f32
    %199 = vector.broadcast %cst_72 : f32 to vector<4x16xf32>
    %200 = arith.addf %199, %198 : vector<4x16xf32>
    %201 = arith.divf %199, %200 : vector<4x16xf32>
    %202 = vector.extract_strided_slice %183 {offsets = [0, 32], sizes = [4, 16], strides = [1, 1]} : vector<4x48xf32> to vector<4x16xf32>
    %203 = vector.extract_strided_slice %185 {offsets = [0, 32], sizes = [4, 16], strides = [1, 1]} : vector<4x48xf32> to vector<4x16xf32>
    %c0_73 = arith.constant 0 : index
    %c0_74 = arith.constant 0 : index
    %204 = vector.load %arg8[%c0_73, %c0_74] : memref<1x16xf32, #tpu.memory_space<vmem>>, vector<1x16xf32>
    %205 = vector.broadcast %204 : vector<1x16xf32> to vector<4x16xf32>
    %206 = arith.addf %203, %205 : vector<4x16xf32>
    %207 = arith.mulf %193, %206 : vector<4x16xf32>
    %208 = arith.addf %202, %207 : vector<4x16xf32>
    %209 = math.tanh %208 : vector<4x16xf32>
    %cst_75 = arith.constant 1.000000e+00 : f32
    %210 = vector.broadcast %cst_75 : f32 to vector<4x16xf32>
    %211 = arith.subf %210, %201 : vector<4x16xf32>
    %212 = arith.mulf %211, %209 : vector<4x16xf32>
    %213 = arith.mulf %201, %178 : vector<4x16xf32>
    %214 = arith.addf %212, %213 : vector<4x16xf32>
    %c5_76 = arith.constant 5 : index
    %c0_77 = arith.constant 0 : index
    %c0_78 = arith.constant 0 : index
    %215 = vector.load %arg19[%c5_76, %c0_77, %c0_78] : memref<8x4x16xf32, #tpu.memory_space<vmem>>, vector<1x4x16xf32>
    %216 = vector.shape_cast %215 : vector<1x4x16xf32> to vector<4x16xf32>
    %217 = vector.shape_cast %214 : vector<4x16xf32> to vector<1x4x16xf32>
    tpu.vector_store %arg19[%c5_76, %c0_77, %c0_78], %217 {strides = array<i32>} : memref<8x4x16xf32, #tpu.memory_space<vmem>>, vector<1x4x16xf32>,
    %c6 = arith.constant 6 : index
    %c0_79 = arith.constant 0 : index
    %c0_80 = arith.constant 0 : index
    %218 = vector.load %arg18[%c6, %c0_79, %c0_80] : memref<8x4x48xf32, #tpu.memory_space<vmem>>, vector<1x4x48xf32>
    %219 = vector.shape_cast %218 : vector<1x4x48xf32> to vector<4x48xf32>
    %c0_81 = arith.constant 0 : index
    %c0_82 = arith.constant 0 : index
    %220 = vector.load %arg6[%c0_81, %c0_82] : memref<16x48xf32, #tpu.memory_space<vmem>>, vector<16x48xf32>
    %cst_83 = arith.constant dense<0.000000e+00> : vector<4x48xf32>
    %221 = tpu.matmul %214, %220, %cst_83 {dimension_numbers = #tpu.dot_dimension_numbers<[1], [0], [0], [1], [0, 0, 1, 1], [], []>} : vector<4x16xf32>, vector<16x48xf32>, vector<4x48xf32> -> vector<4x48xf32>
    %222 = vector.extract_strided_slice %219 {offsets = [0, 0], sizes = [4, 16], strides = [1, 1]} : vector<4x48xf32> to vector<4x16xf32>
    %223 = vector.extract_strided_slice %221 {offsets = [0, 0], sizes = [4, 16], strides = [1, 1]} : vector<4x48xf32> to vector<4x16xf32>
    %224 = arith.addf %222, %223 : vector<4x16xf32>
    %225 = arith.negf %224 : vector<4x16xf32>
    %226 = math.exp %225 : vector<4x16xf32>
    %cst_84 = arith.constant 1.000000e+00 : f32
    %227 = vector.broadcast %cst_84 : f32 to vector<4x16xf32>
    %228 = arith.addf %227, %226 : vector<4x16xf32>
    %229 = arith.divf %227, %228 : vector<4x16xf32>
    %230 = vector.extract_strided_slice %219 {offsets = [0, 16], sizes = [4, 16], strides = [1, 1]} : vector<4x48xf32> to vector<4x16xf32>
    %231 = vector.extract_strided_slice %221 {offsets = [0, 16], sizes = [4, 16], strides = [1, 1]} : vector<4x48xf32> to vector<4x16xf32>
    %232 = arith.addf %230, %231 : vector<4x16xf32>
    %233 = arith.negf %232 : vector<4x16xf32>
    %234 = math.exp %233 : vector<4x16xf32>
    %cst_85 = arith.constant 1.000000e+00 : f32
    %235 = vector.broadcast %cst_85 : f32 to vector<4x16xf32>
    %236 = arith.addf %235, %234 : vector<4x16xf32>
    %237 = arith.divf %235, %236 : vector<4x16xf32>
    %238 = vector.extract_strided_slice %219 {offsets = [0, 32], sizes = [4, 16], strides = [1, 1]} : vector<4x48xf32> to vector<4x16xf32>
    %239 = vector.extract_strided_slice %221 {offsets = [0, 32], sizes = [4, 16], strides = [1, 1]} : vector<4x48xf32> to vector<4x16xf32>
    %c0_86 = arith.constant 0 : index
    %c0_87 = arith.constant 0 : index
    %240 = vector.load %arg8[%c0_86, %c0_87] : memref<1x16xf32, #tpu.memory_space<vmem>>, vector<1x16xf32>
    %241 = vector.broadcast %240 : vector<1x16xf32> to vector<4x16xf32>
    %242 = arith.addf %239, %241 : vector<4x16xf32>
    %243 = arith.mulf %229, %242 : vector<4x16xf32>
    %244 = arith.addf %238, %243 : vector<4x16xf32>
    %245 = math.tanh %244 : vector<4x16xf32>
    %cst_88 = arith.constant 1.000000e+00 : f32
    %246 = vector.broadcast %cst_88 : f32 to vector<4x16xf32>
    %247 = arith.subf %246, %237 : vector<4x16xf32>
    %248 = arith.mulf %247, %245 : vector<4x16xf32>
    %249 = arith.mulf %237, %214 : vector<4x16xf32>
    %250 = arith.addf %248, %249 : vector<4x16xf32>
    %c6_89 = arith.constant 6 : index
    %c0_90 = arith.constant 0 : index
    %c0_91 = arith.constant 0 : index
    %251 = vector.load %arg19[%c6_89, %c0_90, %c0_91] : memref<8x4x16xf32, #tpu.memory_space<vmem>>, vector<1x4x16xf32>
    %252 = vector.shape_cast %251 : vector<1x4x16xf32> to vector<4x16xf32>
    %253 = vector.shape_cast %250 : vector<4x16xf32> to vector<1x4x16xf32>
    tpu.vector_store %arg19[%c6_89, %c0_90, %c0_91], %253 {strides = array<i32>} : memref<8x4x16xf32, #tpu.memory_space<vmem>>, vector<1x4x16xf32>,
    %c7 = arith.constant 7 : index
    %c0_92 = arith.constant 0 : index
    %c0_93 = arith.constant 0 : index
    %254 = vector.load %arg18[%c7, %c0_92, %c0_93] : memref<8x4x48xf32, #tpu.memory_space<vmem>>, vector<1x4x48xf32>
    %255 = vector.shape_cast %254 : vector<1x4x48xf32> to vector<4x48xf32>
    %c0_94 = arith.constant 0 : index
    %c0_95 = arith.constant 0 : index
    %256 = vector.load %arg6[%c0_94, %c0_95] : memref<16x48xf32, #tpu.memory_space<vmem>>, vector<16x48xf32>
    %cst_96 = arith.constant dense<0.000000e+00> : vector<4x48xf32>
    %257 = tpu.matmul %250, %256, %cst_96 {dimension_numbers = #tpu.dot_dimension_numbers<[1], [0], [0], [1], [0, 0, 1, 1], [], []>} : vector<4x16xf32>, vector<16x48xf32>, vector<4x48xf32> -> vector<4x48xf32>
    %258 = vector.extract_strided_slice %255 {offsets = [0, 0], sizes = [4, 16], strides = [1, 1]} : vector<4x48xf32> to vector<4x16xf32>
    %259 = vector.extract_strided_slice %257 {offsets = [0, 0], sizes = [4, 16], strides = [1, 1]} : vector<4x48xf32> to vector<4x16xf32>
    %260 = arith.addf %258, %259 : vector<4x16xf32>
    %261 = arith.negf %260 : vector<4x16xf32>
    %262 = math.exp %261 : vector<4x16xf32>
    %cst_97 = arith.constant 1.000000e+00 : f32
    %263 = vector.broadcast %cst_97 : f32 to vector<4x16xf32>
    %264 = arith.addf %263, %262 : vector<4x16xf32>
    %265 = arith.divf %263, %264 : vector<4x16xf32>
    %266 = vector.extract_strided_slice %255 {offsets = [0, 16], sizes = [4, 16], strides = [1, 1]} : vector<4x48xf32> to vector<4x16xf32>
    %267 = vector.extract_strided_slice %257 {offsets = [0, 16], sizes = [4, 16], strides = [1, 1]} : vector<4x48xf32> to vector<4x16xf32>
    %268 = arith.addf %266, %267 : vector<4x16xf32>
    %269 = arith.negf %268 : vector<4x16xf32>
    %270 = math.exp %269 : vector<4x16xf32>
    %cst_98 = arith.constant 1.000000e+00 : f32
    %271 = vector.broadcast %cst_98 : f32 to vector<4x16xf32>
    %272 = arith.addf %271, %270 : vector<4x16xf32>
    %273 = arith.divf %271, %272 : vector<4x16xf32>
    %274 = vector.extract_strided_slice %255 {offsets = [0, 32], sizes = [4, 16], strides = [1, 1]} : vector<4x48xf32> to vector<4x16xf32>
    %275 = vector.extract_strided_slice %257 {offsets = [0, 32], sizes = [4, 16], strides = [1, 1]} : vector<4x48xf32> to vector<4x16xf32>
    %c0_99 = arith.constant 0 : index
    %c0_100 = arith.constant 0 : index
    %276 = vector.load %arg8[%c0_99, %c0_100] : memref<1x16xf32, #tpu.memory_space<vmem>>, vector<1x16xf32>
    %277 = vector.broadcast %276 : vector<1x16xf32> to vector<4x16xf32>
    %278 = arith.addf %275, %277 : vector<4x16xf32>
    %279 = arith.mulf %265, %278 : vector<4x16xf32>
    %280 = arith.addf %274, %279 : vector<4x16xf32>
    %281 = math.tanh %280 : vector<4x16xf32>
    %cst_101 = arith.constant 1.000000e+00 : f32
    %282 = vector.broadcast %cst_101 : f32 to vector<4x16xf32>
    %283 = arith.subf %282, %273 : vector<4x16xf32>
    %284 = arith.mulf %283, %281 : vector<4x16xf32>
    %285 = arith.mulf %273, %250 : vector<4x16xf32>
    %286 = arith.addf %284, %285 : vector<4x16xf32>
    %c7_102 = arith.constant 7 : index
    %c0_103 = arith.constant 0 : index
    %c0_104 = arith.constant 0 : index
    %287 = vector.load %arg19[%c7_102, %c0_103, %c0_104] : memref<8x4x16xf32, #tpu.memory_space<vmem>>, vector<1x4x16xf32>
    %288 = vector.shape_cast %287 : vector<1x4x16xf32> to vector<4x16xf32>
    %289 = vector.shape_cast %286 : vector<4x16xf32> to vector<1x4x16xf32>
    tpu.vector_store %arg19[%c7_102, %c0_103, %c0_104], %289 {strides = array<i32>} : memref<8x4x16xf32, #tpu.memory_space<vmem>>, vector<1x4x16xf32>,
    %c0_105 = arith.constant 0 : index
    %c0_106 = arith.constant 0 : index
    %c0_107 = arith.constant 0 : index
    %290 = vector.load %arg19[%c0_105, %c0_106, %c0_107] : memref<8x4x16xf32, #tpu.memory_space<vmem>>, vector<8x4x16xf32>
    %c0_108 = arith.constant 0 : index
    %c0_109 = arith.constant 0 : index
    %291 = vector.load %arg2[%c0_108, %c0_109] : memref<4x16xf32, #tpu.memory_space<vmem>>, vector<4x16xf32>
    %292 = vector.shape_cast %291 : vector<4x16xf32> to vector<1x4x16xf32>
    %293 = vector.broadcast %292 : vector<1x4x16xf32> to vector<8x4x16xf32>
    %294 = arith.mulf %290, %293 : vector<8x4x16xf32>
    %cst_110 = arith.constant dense<0.000000e+00> : vector<8x4xf32>
    %295 = vector.multi_reduction <add>, %294, %cst_110 [2] : vector<8x4x16xf32> to vector<8x4xf32>
    %c0_111 = arith.constant 0 : index
    %c0_112 = arith.constant 0 : index
    %296 = vector.load %arg4[%c0_111, %c0_112] : memref<1x4xi32, #tpu.memory_space<vmem>>, vector<1x4xi32>
    %c1_i32_113 = arith.constant 1 : i32
    %297 = vector.broadcast %c1_i32_113 : i32 to vector<1x4xi32>
    %298 = arith.maxsi %296, %297 : vector<1x4xi32>
    %299 = tpu.iota {dimensions = array<i32: 0>} : vector<8x4xi32>
    %300 = vector.broadcast %298 : vector<1x4xi32> to vector<8x4xi32>
    %301 = arith.cmpi slt, %299, %300 : vector<8x4xi32>
    %cst_114 = arith.constant -1.000000e+30 : f32
    %302 = vector.broadcast %cst_114 : f32 to vector<8x4xf32>
    %303 = arith.select %301, %295, %302 : vector<8x4xi1>, vector<8x4xf32>
    %cst_115 = arith.constant dense<0xFF800000> : vector<4xf32>
    %304 = vector.multi_reduction <maximumf>, %303, %cst_115 [0] : vector<8x4xf32> to vector<4xf32>
    %305 = vector.shape_cast %304 : vector<4xf32> to vector<1x4xf32>
    %306 = vector.broadcast %305 : vector<1x4xf32> to vector<8x4xf32>
    %307 = arith.subf %303, %306 : vector<8x4xf32>
    %308 = math.exp %307 : vector<8x4xf32>
    %cst_116 = arith.constant dense<0.000000e+00> : vector<4xf32>
    %309 = vector.multi_reduction <add>, %308, %cst_116 [0] : vector<8x4xf32> to vector<4xf32>
    %310 = vector.shape_cast %309 : vector<4xf32> to vector<1x4xf32>
    %311 = vector.broadcast %310 : vector<1x4xf32> to vector<8x4xf32>
    %312 = arith.divf %308, %311 : vector<8x4xf32>
    %313 = vector.shape_cast %312 : vector<8x4xf32> to vector<8x4x1xf32>
    %314 = vector.broadcast %313 : vector<8x4x1xf32> to vector<8x4x16xf32>
    %315 = arith.mulf %314, %290 : vector<8x4x16xf32>
    %cst_117 = arith.constant dense<0.000000e+00> : vector<4x16xf32>
    %316 = vector.multi_reduction <add>, %315, %cst_117 [0] : vector<8x4x16xf32> to vector<4x16xf32>
    %c0_118 = arith.constant 0 : index
    %c0_119 = arith.constant 0 : index
    %317 = vector.load %arg1[%c0_118, %c0_119] : memref<4x16xf32, #tpu.memory_space<vmem>>, vector<4x16xf32>
    %c0_120 = arith.constant 0 : index
    %c0_121 = arith.constant 0 : index
    %318 = vector.load %arg9[%c0_120, %c0_121] : memref<16x32xf32, #tpu.memory_space<vmem>>, vector<16x32xf32>
    %cst_122 = arith.constant dense<0.000000e+00> : vector<4x32xf32>
    %319 = tpu.matmul %317, %318, %cst_122 {dimension_numbers = #tpu.dot_dimension_numbers<[1], [0], [0], [1], [0, 0, 1, 1], [], []>} : vector<4x16xf32>, vector<16x32xf32>, vector<4x32xf32> -> vector<4x32xf32>
    %c0_123 = arith.constant 0 : index
    %c0_124 = arith.constant 0 : index
    %320 = vector.load %arg10[%c0_123, %c0_124] : memref<16x32xf32, #tpu.memory_space<vmem>>, vector<16x32xf32>
    %cst_125 = arith.constant dense<0.000000e+00> : vector<4x32xf32>
    %321 = tpu.matmul %291, %320, %cst_125 {dimension_numbers = #tpu.dot_dimension_numbers<[1], [0], [0], [1], [0, 0, 1, 1], [], []>} : vector<4x16xf32>, vector<16x32xf32>, vector<4x32xf32> -> vector<4x32xf32>
    %322 = arith.addf %319, %321 : vector<4x32xf32>
    %c0_126 = arith.constant 0 : index
    %c0_127 = arith.constant 0 : index
    %323 = vector.load %arg11[%c0_126, %c0_127] : memref<16x32xf32, #tpu.memory_space<vmem>>, vector<16x32xf32>
    %cst_128 = arith.constant dense<0.000000e+00> : vector<4x32xf32>
    %324 = tpu.matmul %316, %323, %cst_128 {dimension_numbers = #tpu.dot_dimension_numbers<[1], [0], [0], [1], [0, 0, 1, 1], [], []>} : vector<4x16xf32>, vector<16x32xf32>, vector<4x32xf32> -> vector<4x32xf32>
    %325 = arith.addf %322, %324 : vector<4x32xf32>
    %c0_129 = arith.constant 0 : index
    %c0_130 = arith.constant 0 : index
    %326 = vector.load %arg12[%c0_129, %c0_130] : memref<1x32xf32, #tpu.memory_space<vmem>>, vector<1x32xf32>
    %327 = vector.broadcast %326 : vector<1x32xf32> to vector<4x32xf32>
    %328 = arith.addf %325, %327 : vector<4x32xf32>
    %cst_131 = arith.constant 0.000000e+00 : f32
    %329 = vector.broadcast %cst_131 : f32 to vector<4x32xf32>
    %330 = arith.maximumf %328, %329 : vector<4x32xf32>
    %c0_132 = arith.constant 0 : index
    %c0_133 = arith.constant 0 : index
    %331 = vector.load %arg13[%c0_132, %c0_133] : memref<32x16xf32, #tpu.memory_space<vmem>>, vector<32x16xf32>
    %cst_134 = arith.constant dense<0.000000e+00> : vector<4x16xf32>
    %332 = tpu.matmul %330, %331, %cst_134 {dimension_numbers = #tpu.dot_dimension_numbers<[1], [0], [0], [1], [0, 0, 1, 1], [], []>} : vector<4x32xf32>, vector<32x16xf32>, vector<4x16xf32> -> vector<4x16xf32>
    %c0_135 = arith.constant 0 : index
    %c0_136 = arith.constant 0 : index
    %333 = vector.load %arg14[%c0_135, %c0_136] : memref<1x16xf32, #tpu.memory_space<vmem>>, vector<1x16xf32>
    %334 = vector.broadcast %333 : vector<1x16xf32> to vector<4x16xf32>
    %335 = arith.addf %332, %334 : vector<4x16xf32>
    %cst_137 = arith.constant 0.000000e+00 : f32
    %336 = vector.broadcast %cst_137 : f32 to vector<4x16xf32>
    %337 = arith.maximumf %335, %336 : vector<4x16xf32>
    %c0_138 = arith.constant 0 : index
    %c0_139 = arith.constant 0 : index
    %338 = vector.load %arg15[%c0_138, %c0_139] : memref<16x1xf32, #tpu.memory_space<vmem>>, vector<16x1xf32>
    %cst_140 = arith.constant dense<0.000000e+00> : vector<4x1xf32>
    %339 = tpu.matmul %337, %338, %cst_140 {dimension_numbers = #tpu.dot_dimension_numbers<[1], [0], [0], [1], [0, 0, 1, 1], [], []>} : vector<4x16xf32>, vector<16x1xf32>, vector<4x1xf32> -> vector<4x1xf32>
    %c0_141 = arith.constant 0 : index
    %c0_142 = arith.constant 0 : index
    %340 = vector.load %arg16[%c0_141, %c0_142] : memref<1x1xf32, #tpu.memory_space<vmem>>, vector<1x1xf32>
    %341 = vector.broadcast %340 : vector<1x1xf32> to vector<4x1xf32>
    %342 = arith.addf %339, %341 : vector<4x1xf32>
    %343 = arith.negf %342 : vector<4x1xf32>
    %344 = math.exp %343 : vector<4x1xf32>
    %cst_143 = arith.constant 1.000000e+00 : f32
    %345 = vector.broadcast %cst_143 : f32 to vector<4x1xf32>
    %346 = arith.addf %345, %344 : vector<4x1xf32>
    %347 = arith.divf %345, %346 : vector<4x1xf32>
    %c0_144 = arith.constant 0 : index
    %c0_145 = arith.constant 0 : index
    %348 = vector.load %arg17[%c0_144, %c0_145] : memref<4x1xf32, #tpu.memory_space<vmem>>, vector<4x1xf32>
    tpu.vector_store %arg17[%c0_144, %c0_145], %347 {strides = array<i32>} : memref<4x1xf32, #tpu.memory_space<vmem>>, vector<4x1xf32>,
    return
  }
  func.func @transform_0(%arg0: i32) -> (i32, i32) {
    %c0_i32 = arith.constant 0 : i32
    %c0_i32_0 = arith.constant 0 : i32
    return %arg0, %c0_i32 : i32, i32
  }
  func.func @transform_1(%arg0: i32) -> (i32, i32) {
    %c0_i32 = arith.constant 0 : i32
    %c0_i32_0 = arith.constant 0 : i32
    return %arg0, %c0_i32 : i32, i32
  }
  func.func @transform_2(%arg0: i32) -> (i32, i32, i32) {
    %c0_i32 = arith.constant 0 : i32
    %c0_i32_0 = arith.constant 0 : i32
    %c0_i32_1 = arith.constant 0 : i32
    return %c0_i32, %arg0, %c0_i32_0 : i32, i32, i32
  }
  func.func @transform_3(%arg0: i32) -> (i32, i32) {
    %c0_i32 = arith.constant 0 : i32
    %c0_i32_0 = arith.constant 0 : i32
    return %c0_i32, %arg0 : i32, i32
  }
  func.func @transform_4(%arg0: i32) -> (i32, i32) {
    %c0_i32 = arith.constant 0 : i32
    %c0_i32_0 = arith.constant 0 : i32
    %c0_i32_1 = arith.constant 0 : i32
    return %c0_i32, %c0_i32_0 : i32, i32
  }
  func.func @transform_5(%arg0: i32) -> (i32, i32) {
    %c0_i32 = arith.constant 0 : i32
    %c0_i32_0 = arith.constant 0 : i32
    %c0_i32_1 = arith.constant 0 : i32
    return %c0_i32, %c0_i32_0 : i32, i32
  }
  func.func @transform_6(%arg0: i32) -> (i32, i32) {
    %c0_i32 = arith.constant 0 : i32
    %c0_i32_0 = arith.constant 0 : i32
    %c0_i32_1 = arith.constant 0 : i32
    return %c0_i32, %c0_i32_0 : i32, i32
  }
  func.func @transform_7(%arg0: i32) -> (i32, i32) {
    %c0_i32 = arith.constant 0 : i32
    %c0_i32_0 = arith.constant 0 : i32
    %c0_i32_1 = arith.constant 0 : i32
    return %c0_i32, %c0_i32_0 : i32, i32
  }
  func.func @transform_8(%arg0: i32) -> (i32, i32) {
    %c0_i32 = arith.constant 0 : i32
    %c0_i32_0 = arith.constant 0 : i32
    %c0_i32_1 = arith.constant 0 : i32
    return %c0_i32, %c0_i32_0 : i32, i32
  }
  func.func @transform_9(%arg0: i32) -> (i32, i32) {
    %c0_i32 = arith.constant 0 : i32
    %c0_i32_0 = arith.constant 0 : i32
    %c0_i32_1 = arith.constant 0 : i32
    return %c0_i32, %c0_i32_0 : i32, i32
  }
  func.func @transform_10(%arg0: i32) -> (i32, i32) {
    %c0_i32 = arith.constant 0 : i32
    %c0_i32_0 = arith.constant 0 : i32
    %c0_i32_1 = arith.constant 0 : i32
    return %c0_i32, %c0_i32_0 : i32, i32
  }
  func.func @transform_11(%arg0: i32) -> (i32, i32) {
    %c0_i32 = arith.constant 0 : i32
    %c0_i32_0 = arith.constant 0 : i32
    %c0_i32_1 = arith.constant 0 : i32
    return %c0_i32, %c0_i32_0 : i32, i32
  }
  func.func @transform_12(%arg0: i32) -> (i32, i32) {
    %c0_i32 = arith.constant 0 : i32
    %c0_i32_0 = arith.constant 0 : i32
    %c0_i32_1 = arith.constant 0 : i32
    return %c0_i32, %c0_i32_0 : i32, i32
  }
  func.func @transform_13(%arg0: i32) -> (i32, i32) {
    %c0_i32 = arith.constant 0 : i32
    %c0_i32_0 = arith.constant 0 : i32
    %c0_i32_1 = arith.constant 0 : i32
    return %c0_i32, %c0_i32_0 : i32, i32
  }
  func.func @transform_14(%arg0: i32) -> (i32, i32) {
    %c0_i32 = arith.constant 0 : i32
    %c0_i32_0 = arith.constant 0 : i32
    %c0_i32_1 = arith.constant 0 : i32
    return %c0_i32, %c0_i32_0 : i32, i32
  }
  func.func @transform_15(%arg0: i32) -> (i32, i32) {
    %c0_i32 = arith.constant 0 : i32
    %c0_i32_0 = arith.constant 0 : i32
    %c0_i32_1 = arith.constant 0 : i32
    return %c0_i32, %c0_i32_0 : i32, i32
  }
  func.func @transform_16(%arg0: i32) -> (i32, i32) {
    %c0_i32 = arith.constant 0 : i32
    %c0_i32_0 = arith.constant 0 : i32
    return %arg0, %c0_i32 : i32, i32
  }
}

</mosaic_0001>

<llo_original>
// kernel: dien_forward.1
$region0: #{dien_forward.1}
  #allocation0 [shape = 'u32[]', space=smem, size = 0x4, offset = 0x4, fixed_abs, tag = 'smem constant byte address 0x4 - core index']
  #allocation1 [shape = 'u32[72,128]{1,0:T(1,128)}', space=vmem, size = 0x9000, scoped, tag = 'internal scratch']
  #allocation2 [shape = 'f32[8,4,48]{2,1,0:T(4,128)}', space=vmem, size = 0x4000, scoped, tag = 'scratch operand']
  #allocation3 [shape = 'f32[8,4,16]{2,1,0:T(4,128)}', space=vmem, size = 0x4000, scoped, tag = 'scratch operand']
  #allocation4 [shape = 'f32[1,1]{1,0:T(1,128)S(1)}', space=vmem, size = 0x200, scoped, tag = 'scoped memory for dien_forward.1']
  %s0 = inlined_call_operand.vmem [shape: f32[4,16], index: 0, kind: input, shape index: {}]
  %s1 = inlined_call_operand.vmem [shape: f32[4,16], index: 1, kind: input, shape index: {}]
  %s2 = inlined_call_operand.vmem [shape: f32[8,4,16], index: 2, kind: input, shape index: {}]
  %s3 = inlined_call_operand.vmem [shape: s32[1,4], index: 3, kind: input, shape index: {}]
  %s4 = inlined_call_operand.vmem [shape: f32[16,48], index: 4, kind: input, shape index: {}]
  %s5 = inlined_call_operand.vmem [shape: f32[16,48], index: 5, kind: input, shape index: {}]
  %s6 = inlined_call_operand.vmem [shape: f32[1,48], index: 6, kind: input, shape index: {}]
  %s7 = inlined_call_operand.vmem [shape: f32[1,16], index: 7, kind: input, shape index: {}]
  %s8 = inlined_call_operand.vmem [shape: f32[16,32], index: 8, kind: input, shape index: {}]
  %s9 = inlined_call_operand.vmem [shape: f32[16,32], index: 9, kind: input, shape index: {}]
  %s10 = inlined_call_operand.vmem [shape: f32[16,32], index: 10, kind: input, shape index: {}]
  %s11 = inlined_call_operand.vmem [shape: f32[1,32], index: 11, kind: input, shape index: {}]
  %s12 = inlined_call_operand.vmem [shape: f32[32,16], index: 12, kind: input, shape index: {}]
  %s13 = inlined_call_operand.vmem [shape: f32[1,16], index: 13, kind: input, shape index: {}]
  %s14 = inlined_call_operand.vmem [shape: f32[16,1], index: 14, kind: input, shape index: {}]
  %s15 = inlined_call_operand.<no memory space> [shape: f32[1,1], index: 15, kind: input, shape index: {}]
  %s16 = inlined_call_operand.vmem [shape: f32[4,1], index: 16, kind: output, shape index: {}]
  %s17 = sld [smem:[#allocation0]]
  $region81: #{dien_forward.1} parent=0
    _
  %s19 = ssub.s32 1, %s17
  %s20 = scalar_select 0, %s19, %s17
  %v21 = vstv %s15
  %22 = vst [vmem:[#allocation4] sm:$0x1] %v21
  // Predicated region
  $region2: #{dien_forward.1} parent=0 // pred_check
    _
  $region3: #{dien_forward.1} parent=0 // pred_check_branch
    %24 = sbr.rel (0) target = $region5
  $region4: #{dien_forward.1} parent=0 // pred_region
    _
  $region5: #{dien_forward.1} parent=0 // pred_fallthru
    _
  // Predicated region
  $region6: #{dien_forward.1} parent=0 // pred_check
    _
  $region7: #{dien_forward.1} parent=0 // pred_check_branch
    %26 = sbr.rel (0) target = $region9
  $region8: #{dien_forward.1} parent=0 // pred_region
    _
  $region9: #{dien_forward.1} parent=0 // pred_fallthru
    _
  // Predicated region
  $region10: #{dien_forward.1} parent=0 // pred_check
    _
  $region11: #{dien_forward.1} parent=0 // pred_check_branch
    %28 = sbr.rel (0) target = $region13
  $region12: #{dien_forward.1} parent=0 // pred_region
    _
  $region13: #{dien_forward.1} parent=0 // pred_fallthru
    _
  // Predicated region
  $region14: #{dien_forward.1} parent=0 // pred_check
    _
  $region15: #{dien_forward.1} parent=0 // pred_check_branch
    %30 = sbr.rel (0) target = $region17
  $region16: #{dien_forward.1} parent=0 // pred_region
    _
  $region17: #{dien_forward.1} parent=0 // pred_fallthru
    _
  // Predicated region
  $region18: #{dien_forward.1} parent=0 // pred_check
    _
  $region19: #{dien_forward.1} parent=0 // pred_check_branch
    %32 = sbr.rel (0) target = $region21
  $region20: #{dien_forward.1} parent=0 // pred_region
    _
  $region21: #{dien_forward.1} parent=0 // pred_fallthru
    _
  // Predicated region
  $region22: #{dien_forward.1} parent=0 // pred_check
    _
  $region23: #{dien_forward.1} parent=0 // pred_check_branch
    %34 = sbr.rel (0) target = $region25
  $region24: #{dien_forward.1} parent=0 // pred_region
    _
  $region25: #{dien_forward.1} parent=0 // pred_fallthru
    _
  // Predicated region
  $region26: #{dien_forward.1} parent=0 // pred_check
    _
  $region27: #{dien_forward.1} parent=0 // pred_check_branch
    %36 = sbr.rel (0) target = $region29
  $region28: #{dien_forward.1} parent=0 // pred_region
    _
  $region29: #{dien_forward.1} parent=0 // pred_fallthru
    _
  // Predicated region
  $region30: #{dien_forward.1} parent=0 // pred_check
    _
  $region31: #{dien_forward.1} parent=0 // pred_check_branch
    %38 = sbr.rel (0) target = $region33
  $region32: #{dien_forward.1} parent=0 // pred_region
    _
  $region33: #{dien_forward.1} parent=0 // pred_fallthru
    _
  // Predicated region
  $region34: #{dien_forward.1} parent=0 // pred_check
    _
  $region35: #{dien_forward.1} parent=0 // pred_check_branch
    %40 = sbr.rel (0) target = $region37
  $region36: #{dien_forward.1} parent=0 // pred_region
    _
  $region37: #{dien_forward.1} parent=0 // pred_fallthru
    _
  // Predicated region
  $region38: #{dien_forward.1} parent=0 // pred_check
    _
  $region39: #{dien_forward.1} parent=0 // pred_check_branch
    %42 = sbr.rel (0) target = $region41
  $region40: #{dien_forward.1} parent=0 // pred_region
    _
  $region41: #{dien_forward.1} parent=0 // pred_fallthru
    _
  // Predicated region
  $region42: #{dien_forward.1} parent=0 // pred_check
    _
  $region43: #{dien_forward.1} parent=0 // pred_check_branch
    %44 = sbr.rel (0) target = $region45
  $region44: #{dien_forward.1} parent=0 // pred_region
    _
  $region45: #{dien_forward.1} parent=0 // pred_fallthru
    _
  // Predicated region
  $region46: #{dien_forward.1} parent=0 // pred_check
    _
  $region47: #{dien_forward.1} parent=0 // pred_check_branch
    %46 = sbr.rel (0) target = $region49
  $region48: #{dien_forward.1} parent=0 // pred_region
    _
  $region49: #{dien_forward.1} parent=0 // pred_fallthru
    _
  // Predicated region
  $region50: #{dien_forward.1} parent=0 // pred_check
    _
  $region51: #{dien_forward.1} parent=0 // pred_check_branch
    %48 = sbr.rel (0) target = $region53
  $region52: #{dien_forward.1} parent=0 // pred_region
    _
  $region53: #{dien_forward.1} parent=0 // pred_fallthru
    _
  // Predicated region
  $region54: #{dien_forward.1} parent=0 // pred_check
    _
  $region55: #{dien_forward.1} parent=0 // pred_check_branch
    %50 = sbr.rel (0) target = $region57
  $region56: #{dien_forward.1} parent=0 // pred_region
    _
  $region57: #{dien_forward.1} parent=0 // pred_fallthru
    _
  // Predicated region
  $region58: #{dien_forward.1} parent=0 // pred_check
    _
  $region59: #{dien_forward.1} parent=0 // pred_check_branch
    %52 = sbr.rel (0) target = $region61
  $region60: #{dien_forward.1} parent=0 // pred_region
    _
  $region61: #{dien_forward.1} parent=0 // pred_fallthru
    _
  // Predicated region
  $region62: #{dien_forward.1} parent=0 // pred_check
    _
  $region63: #{dien_forward.1} parent=0 // pred_check_branch
    %54 = sbr.rel (0) target = $region65
  $region64: #{dien_forward.1} parent=0 // pred_region
    _
  $region65: #{dien_forward.1} parent=0 // pred_fallthru
    _
  loop: start=0, step=1, limit=8
  $region66: #{dien_forward.1} parent=0 // loop_pre_header
    _
  $region67: #{dien_forward.1} parent=0 // loop_header
    %s56 = sphi 0, %s60
    %p57 = scmp.ge.s32.totalorder %s56, 8
  $region68: #{dien_forward.1} parent=0 // loop_header_branch
    %59 = sbr.rel (%p57) target = $region72
  $region69: #{dien_forward.1} parent=0 // loop_body
    %s61 = smul.u32 %s56, 4
    %s62 = scalar_lea.vmem %s2, %s61
    %v63 = vld [vmem:[%s62] sm:$0xf]
    %v64 = vld [vmem:[%s4] sm:$0xff]
    %v65 = vld [vmem:[%s4 + $0x8] sm:$0xff]
    %v66 = vld [vmem:[%s6] sm:$0x1]
    %v68 = vperm.slane %v66, 0
    %vm70 = vcmask 130048
    %v72 = vsel %vm70, %v63, 0
    %74 = vmatpush.msra.mxu0 0.0
    %75 = vmatpush.msra.mxu0 0.0
    %76 = vmatpush.msra.mxu0 0.0
    %77 = vmatpush.msra.mxu0 0.0
    %78 = vmatpush.msra.mxu0 0.0
    %79 = vmatpush.msra.mxu0 0.0
    %80 = vmatpush.msra.mxu0 0.0
    %81 = vmatpush.msra.mxu0 0.0
    %82 = vmatpush.msra.mxu0 0.0
    %83 = vmatpush.msra.mxu0 0.0
    %84 = vmatpush.msra.mxu0 0.0
    %85 = vmatpush.msra.mxu0 0.0
    %86 = vmatpush.msra.mxu0 0.0
    %87 = vmatpush.msra.mxu0 0.0
    %88 = vmatpush.msra.mxu0 %v65
    %89 = vmatpush.msra.mxu0 %v64
    %90 = vmatmul.f32.gmra.mxu0 %v72
    %v91 = vpop.f32.mrf.mxu0
    %v92 = vadd.f32 %v68, %v91
    %93 = vdwg.mxu0
    %s94 = scalar_lea.vmem [#allocation2], %s61
    %vm95 = vcmask 388096
    %96 = vst.msk [vmem:[%s94] sm:$0xf] %vm95, %v92
  $region70: #{dien_forward.1} parent=0 // loop_footer
    %s60 = sadd.s32 1, %s56
  $region71: #{dien_forward.1} parent=0 // loop_footer_branch
    %55 = sbr.rel target = $region67
  $region72: #{dien_forward.1} parent=0 // loop_exit
    _
  %v97 = vld [vmem:[#allocation2] sm:$0xf]
  %v98 = vld [vmem:[%s5] sm:$0xff]
  %v99 = vld [vmem:[%s5 + $0x8] sm:$0xff]
  %vm100 = vcmask 130048
  %v102 = vsel %vm100, 0.0, 0
  %104 = vmatpush.msra.mxu0 0.0
  %105 = vmatpush.msra.mxu0 0.0
  %106 = vmatpush.msra.mxu0 0.0
  %107 = vmatpush.msra.mxu0 0.0
  %108 = vmatpush.msra.mxu0 0.0
  %109 = vmatpush.msra.mxu0 0.0
  %110 = vmatpush.msra.mxu0 0.0
  %111 = vmatpush.msra.mxu0 0.0
  %112 = vmatpush.msra.mxu0 0.0
  %113 = vmatpush.msra.mxu0 0.0
  %114 = vmatpush.msra.mxu0 0.0
  %115 = vmatpush.msra.mxu0 0.0
  %116 = vmatpush.msra.mxu0 0.0
  %117 = vmatpush.msra.mxu0 0.0
  %118 = vmatpush.msra.mxu0 %v99
  %119 = vmatpush.msra.mxu0 %v98
  %120 = vmatmul.f32.gmra.mxu0 %v102
  %v121 = vpop.f32.mrf.mxu0
  %v122 = vadd.f32 0.0, %v121
  %123 = vdwg.mxu0
  %v124 = vadd.f32 %v97, %v122
  %v125 = vxor.u32 %v124, 2147483648
  %v126 = vmul.f32 %v125, 1.442695
  %v127 = vpow.pop %v126
  %v128 = vadd.f32 %v127, 1.0
  %v129 = vrcp.pop %v128
  %v130 = vmul.f32 %v128, %v129
  %v131 = vsub.f32 1.0, %v130
  %v132 = vmul.f32 %v129, %v131
  %v133 = vadd.f32 %v129, %v132
  %vm134 = vweird.f32 %v128
  %vm135 = vweird.f32 %v129
  %vm136 = vmor %vm134, %vm135
  %v137 = vsel %vm136, %v129, %v133
  %v138 = vand.u32 2147483647, %v128
  %vm139 = vcmp.eq.f32.partialorder %v138, 8.507059e+37
  %v140 = vand.u32 %v128, 2147483648
  %v141 = vor.u32 1.1754944e-38, %v140
  %v142 = vsel %vm139, %v141, %v137
  %v143 = vmul.f32 1.0, %v142
  %v144 = vld [vmem:[%s7] sm:$0x1]
  %v146 = vperm.slane %v144, 0
  %147 = vrot.lane.b32.xlu0 %v146, 32
  %v148 = vpop.permute.xlu0 %147
  %v150 = vadd.f32 %v122, %v148
  %152 = vrot.lane.b32.xlu0 %v150, 96
  %v153 = vpop.permute.xlu0 %152
  %v155 = vmul.f32 %v143, %v153
  %157 = vrot.lane.b32.xlu0 %v155, 32
  %v158 = vpop.permute.xlu0 %157
  %v160 = vadd.f32 %v97, %v158
  %v161 = vtanh.pop %v160
  %v162 = vsub.f32 1.0, %v143
  %164 = vrot.lane.b32.xlu0 %v161, 112
  %v165 = vpop.permute.xlu0 %164
  %v167 = vmul.f32 %v162, %v165
  %v168 = vmul.f32 %v143, 0.0
  %v169 = vadd.f32 %v167, %v168
  %171 = vrot.lane.b32.xlu0 %v169, 112
  %v172 = vpop.permute.xlu0 %171
  %vm174 = vcmask 125952
  %175 = vst.msk [vmem:[#allocation3] sm:$0xf] %vm174, %v172
  %s176 = scalar_lea.vmem [#allocation2], 4
  %v177 = vld [vmem:[%s176] sm:$0xf]
  %v178 = vld [vmem:[%s5] sm:$0xff]
  %v179 = vld [vmem:[%s5 + $0x8] sm:$0xff]
  %v180 = vsel %vm100, %v172, 0
  %182 = vmatpush.msra.mxu0 0.0
  %183 = vmatpush.msra.mxu0 0.0
  %184 = vmatpush.msra.mxu0 0.0
  %185 = vmatpush.msra.mxu0 0.0
  %186 = vmatpush.msra.mxu0 0.0
  %187 = vmatpush.msra.mxu0 0.0
  %188 = vmatpush.msra.mxu0 0.0
  %189 = vmatpush.msra.mxu0 0.0
  %190 = vmatpush.msra.mxu0 0.0
  %191 = vmatpush.msra.mxu0 0.0
  %192 = vmatpush.msra.mxu0 0.0
  %193 = vmatpush.msra.mxu0 0.0
  %194 = vmatpush.msra.mxu0 0.0
  %195 = vmatpush.msra.mxu0 0.0
  %196 = vmatpush.msra.mxu0 %v179
  %197 = vmatpush.msra.mxu0 %v178
  %198 = vmatmul.f32.gmra.mxu0 %v180
  %v199 = vpop.f32.mrf.mxu0
  %v200 = vadd.f32 0.0, %v199
  %201 = vdwg.mxu0
  %v202 = vadd.f32 %v177, %v200
  %v203 = vxor.u32 %v202, 2147483648
  %v204 = vmul.f32 %v203, 1.442695
  %v205 = vpow.pop %v204
  %v206 = vadd.f32 %v205, 1.0
  %v207 = vrcp.pop %v206
  %v208 = vmul.f32 %v206, %v207
  %v209 = vsub.f32 1.0, %v208
  %v210 = vmul.f32 %v207, %v209
  %v211 = vadd.f32 %v207, %v210
  %vm212 = vweird.f32 %v206
  %vm213 = vweird.f32 %v207
  %vm214 = vmor %vm212, %vm213
  %v215 = vsel %vm214, %v207, %v211
  %v216 = vand.u32 2147483647, %v206
  %vm217 = vcmp.eq.f32.partialorder %v216, 8.507059e+37
  %v218 = vand.u32 %v206, 2147483648
  %v219 = vor.u32 1.1754944e-38, %v218
  %v220 = vsel %vm217, %v219, %v215
  %v221 = vmul.f32 1.0, %v220
  %v222 = vld [vmem:[%s7] sm:$0x1]
  %v224 = vperm.slane %v222, 0
  %225 = vrot.lane.b32.xlu0 %v224, 32
  %v226 = vpop.permute.xlu0 %225
  %v228 = vadd.f32 %v200, %v226
  %230 = vrot.lane.b32.xlu0 %v228, 96
  %v231 = vpop.permute.xlu0 %230
  %v233 = vmul.f32 %v221, %v231
  %235 = vrot.lane.b32.xlu0 %v233, 32
  %v236 = vpop.permute.xlu0 %235
  %v238 = vadd.f32 %v177, %v236
  %v239 = vtanh.pop %v238
  %v240 = vsub.f32 1.0, %v221
  %242 = vrot.lane.b32.xlu0 %v239, 112
  %v243 = vpop.permute.xlu0 %242
  %v245 = vmul.f32 %v240, %v243
  %v246 = vmul.f32 %v221, %v169
  %v247 = vadd.f32 %v245, %v246
  %249 = vrot.lane.b32.xlu0 %v247, 112
  %v250 = vpop.permute.xlu0 %249
  %s252 = scalar_lea.vmem [#allocation3], 4
  %253 = vst.msk [vmem:[%s252] sm:$0xf] %vm174, %v250
  %s254 = scalar_lea.vmem [#allocation2], 8
  %v255 = vld [vmem:[%s254] sm:$0xf]
  %v256 = vld [vmem:[%s5] sm:$0xff]
  %v257 = vld [vmem:[%s5 + $0x8] sm:$0xff]
  %v258 = vsel %vm100, %v250, 0
  %260 = vmatpush.msra.mxu0 0.0
  %261 = vmatpush.msra.mxu0 0.0
  %262 = vmatpush.msra.mxu0 0.0
  %263 = vmatpush.msra.mxu0 0.0
  %264 = vmatpush.msra.mxu0 0.0
  %265 = vmatpush.msra.mxu0 0.0
  %266 = vmatpush.msra.mxu0 0.0
  %267 = vmatpush.msra.mxu0 0.0
  %268 = vmatpush.msra.mxu0 0.0
  %269 = vmatpush.msra.mxu0 0.0
  %270 = vmatpush.msra.mxu0 0.0
  %271 = vmatpush.msra.mxu0 0.0
  %272 = vmatpush.msra.mxu0 0.0
  %273 = vmatpush.msra.mxu0 0.0
  %274 = vmatpush.msra.mxu0 %v257
  %275 = vmatpush.msra.mxu0 %v256
  %276 = vmatmul.f32.gmra.mxu0 %v258
  %v277 = vpop.f32.mrf.mxu0
  %v278 = vadd.f32 0.0, %v277
  %279 = vdwg.mxu0
  %v280 = vadd.f32 %v255, %v278
  %v281 = vxor.u32 %v280, 2147483648
  %v282 = vmul.f32 %v281, 1.442695
  %v283 = vpow.pop %v282
  %v284 = vadd.f32 %v283, 1.0
  %v285 = vrcp.pop %v284
  %v286 = vmul.f32 %v284, %v285
  %v287 = vsub.f32 1.0, %v286
  %v288 = vmul.f32 %v285, %v287
  %v289 = vadd.f32 %v285, %v288
  %vm290 = vweird.f32 %v284
  %vm291 = vweird.f32 %v285
  %vm292 = vmor %vm290, %vm291
  %v293 = vsel %vm292, %v285, %v289
  %v294 = vand.u32 2147483647, %v284
  %vm295 = vcmp.eq.f32.partialorder %v294, 8.507059e+37
  %v296 = vand.u32 %v284, 2147483648
  %v297 = vor.u32 1.1754944e-38, %v296
  %v298 = vsel %vm295, %v297, %v293
  %v299 = vmul.f32 1.0, %v298
  %v300 = vld [vmem:[%s7] sm:$0x1]
  %v302 = vperm.slane %v300, 0
  %303 = vrot.lane.b32.xlu0 %v302, 32
  %v304 = vpop.permute.xlu0 %303
  %v306 = vadd.f32 %v278, %v304
  %308 = vrot.lane.b32.xlu0 %v306, 96
  %v309 = vpop.permute.xlu0 %308
  %v311 = vmul.f32 %v299, %v309
  %313 = vrot.lane.b32.xlu0 %v311, 32
  %v314 = vpop.permute.xlu0 %313
  %v316 = vadd.f32 %v255, %v314
  %v317 = vtanh.pop %v316
  %v318 = vsub.f32 1.0, %v299
  %320 = vrot.lane.b32.xlu0 %v317, 112
  %v321 = vpop.permute.xlu0 %320
  %v323 = vmul.f32 %v318, %v321
  %v324 = vmul.f32 %v299, %v247
  %v325 = vadd.f32 %v323, %v324
  %327 = vrot.lane.b32.xlu0 %v325, 112
  %v328 = vpop.permute.xlu0 %327
  %s330 = scalar_lea.vmem [#allocation3], 8
  %331 = vst.msk [vmem:[%s330] sm:$0xf] %vm174, %v328
  %s332 = scalar_lea.vmem [#allocation2], 12
  %v333 = vld [vmem:[%s332] sm:$0xf]
  %v334 = vld [vmem:[%s5] sm:$0xff]
  %v335 = vld [vmem:[%s5 + $0x8] sm:$0xff]
  %v336 = vsel %vm100, %v328, 0
  %338 = vmatpush.msra.mxu0 0.0
  %339 = vmatpush.msra.mxu0 0.0
  %340 = vmatpush.msra.mxu0 0.0
  %341 = vmatpush.msra.mxu0 0.0
  %342 = vmatpush.msra.mxu0 0.0
  %343 = vmatpush.msra.mxu0 0.0
  %344 = vmatpush.msra.mxu0 0.0
  %345 = vmatpush.msra.mxu0 0.0
  %346 = vmatpush.msra.mxu0 0.0
  %347 = vmatpush.msra.mxu0 0.0
  %348 = vmatpush.msra.mxu0 0.0
  %349 = vmatpush.msra.mxu0 0.0
  %350 = vmatpush.msra.mxu0 0.0
  %351 = vmatpush.msra.mxu0 0.0
  %352 = vmatpush.msra.mxu0 %v335
  %353 = vmatpush.msra.mxu0 %v334
  %354 = vmatmul.f32.gmra.mxu0 %v336
  %v355 = vpop.f32.mrf.mxu0
  %v356 = vadd.f32 0.0, %v355
  %357 = vdwg.mxu0
  %v358 = vadd.f32 %v333, %v356
  %v359 = vxor.u32 %v358, 2147483648
  %v360 = vmul.f32 %v359, 1.442695
  %v361 = vpow.pop %v360
  %v362 = vadd.f32 %v361, 1.0
  %v363 = vrcp.pop %v362
  %v364 = vmul.f32 %v362, %v363
  %v365 = vsub.f32 1.0, %v364
  %v366 = vmul.f32 %v363, %v365
  %v367 = vadd.f32 %v363, %v366
  %vm368 = vweird.f32 %v362
  %vm369 = vweird.f32 %v363
  %vm370 = vmor %vm368, %vm369
  %v371 = vsel %vm370, %v363, %v367
  %v372 = vand.u32 2147483647, %v362
  %vm373 = vcmp.eq.f32.partialorder %v372, 8.507059e+37
  %v374 = vand.u32 %v362, 2147483648
  %v375 = vor.u32 1.1754944e-38, %v374
  %v376 = vsel %vm373, %v375, %v371
  %v377 = vmul.f32 1.0, %v376
  %v378 = vld [vmem:[%s7] sm:$0x1]
  %v380 = vperm.slane %v378, 0
  %381 = vrot.lane.b32.xlu0 %v380, 32
  %v382 = vpop.permute.xlu0 %381
  %v384 = vadd.f32 %v356, %v382
  %386 = vrot.lane.b32.xlu0 %v384, 96
  %v387 = vpop.permute.xlu0 %386
  %v389 = vmul.f32 %v377, %v387
  %391 = vrot.lane.b32.xlu0 %v389, 32
  %v392 = vpop.permute.xlu0 %391
  %v394 = vadd.f32 %v333, %v392
  %v395 = vtanh.pop %v394
  %v396 = vsub.f32 1.0, %v377
  %398 = vrot.lane.b32.xlu0 %v395, 112
  %v399 = vpop.permute.xlu0 %398
  %v401 = vmul.f32 %v396, %v399
  %v402 = vmul.f32 %v377, %v325
  %v403 = vadd.f32 %v401, %v402
  %405 = vrot.lane.b32.xlu0 %v403, 112
  %v406 = vpop.permute.xlu0 %405
  %s408 = scalar_lea.vmem [#allocation3], 12
  %409 = vst.msk [vmem:[%s408] sm:$0xf] %vm174, %v406
  %s410 = scalar_lea.vmem [#allocation2], 16
  %v411 = vld [vmem:[%s410] sm:$0xf]
  %v412 = vld [vmem:[%s5] sm:$0xff]
  %v413 = vld [vmem:[%s5 + $0x8] sm:$0xff]
  %v414 = vsel %vm100, %v406, 0
  %416 = vmatpush.msra.mxu0 0.0
  %417 = vmatpush.msra.mxu0 0.0
  %418 = vmatpush.msra.mxu0 0.0
  %419 = vmatpush.msra.mxu0 0.0
  %420 = vmatpush.msra.mxu0 0.0
  %421 = vmatpush.msra.mxu0 0.0
  %422 = vmatpush.msra.mxu0 0.0
  %423 = vmatpush.msra.mxu0 0.0
  %424 = vmatpush.msra.mxu0 0.0
  %425 = vmatpush.msra.mxu0 0.0
  %426 = vmatpush.msra.mxu0 0.0
  %427 = vmatpush.msra.mxu0 0.0
  %428 = vmatpush.msra.mxu0 0.0
  %429 = vmatpush.msra.mxu0 0.0
  %430 = vmatpush.msra.mxu0 %v413
  %431 = vmatpush.msra.mxu0 %v412
  %432 = vmatmul.f32.gmra.mxu0 %v414
  %v433 = vpop.f32.mrf.mxu0
  %v434 = vadd.f32 0.0, %v433
  %435 = vdwg.mxu0
  %v436 = vadd.f32 %v411, %v434
  %v437 = vxor.u32 %v436, 2147483648
  %v438 = vmul.f32 %v437, 1.442695
  %v439 = vpow.pop %v438
  %v440 = vadd.f32 %v439, 1.0
  %v441 = vrcp.pop %v440
  %v442 = vmul.f32 %v440, %v441
  %v443 = vsub.f32 1.0, %v442
  %v444 = vmul.f32 %v441, %v443
  %v445 = vadd.f32 %v441, %v444
  %vm446 = vweird.f32 %v440
  %vm447 = vweird.f32 %v441
  %vm448 = vmor %vm446, %vm447
  %v449 = vsel %vm448, %v441, %v445
  %v450 = vand.u32 2147483647, %v440
  %vm451 = vcmp.eq.f32.partialorder %v450, 8.507059e+37
  %v452 = vand.u32 %v440, 2147483648
  %v453 = vor.u32 1.1754944e-38, %v452
  %v454 = vsel %vm451, %v453, %v449
  %v455 = vmul.f32 1.0, %v454
  %v456 = vld [vmem:[%s7] sm:$0x1]
  %v458 = vperm.slane %v456, 0
  %459 = vrot.lane.b32.xlu0 %v458, 32
  %v460 = vpop.permute.xlu0 %459
  %v462 = vadd.f32 %v434, %v460
  %464 = vrot.lane.b32.xlu0 %v462, 96
  %v465 = vpop.permute.xlu0 %464
  %v467 = vmul.f32 %v455, %v465
  %469 = vrot.lane.b32.xlu0 %v467, 32
  %v470 = vpop.permute.xlu0 %469
  %v472 = vadd.f32 %v411, %v470
  %v473 = vtanh.pop %v472
  %v474 = vsub.f32 1.0, %v455
  %476 = vrot.lane.b32.xlu0 %v473, 112
  %v477 = vpop.permute.xlu0 %476
  %v479 = vmul.f32 %v474, %v477
  %v480 = vmul.f32 %v455, %v403
  %v481 = vadd.f32 %v479, %v480
  %483 = vrot.lane.b32.xlu0 %v481, 112
  %v484 = vpop.permute.xlu0 %483
  %s486 = scalar_lea.vmem [#allocation3], 16
  %487 = vst.msk [vmem:[%s486] sm:$0xf] %vm174, %v484
  %s488 = scalar_lea.vmem [#allocation2], 20
  %v489 = vld [vmem:[%s488] sm:$0xf]
  %v490 = vld [vmem:[%s5] sm:$0xff]
  %v491 = vld [vmem:[%s5 + $0x8] sm:$0xff]
  %v492 = vsel %vm100, %v484, 0
  %494 = vmatpush.msra.mxu0 0.0
  %495 = vmatpush.msra.mxu0 0.0
  %496 = vmatpush.msra.mxu0 0.0
  %497 = vmatpush.msra.mxu0 0.0
  %498 = vmatpush.msra.mxu0 0.0
  %499 = vmatpush.msra.mxu0 0.0
  %500 = vmatpush.msra.mxu0 0.0
  %501 = vmatpush.msra.mxu0 0.0
  %502 = vmatpush.msra.mxu0 0.0
  %503 = vmatpush.msra.mxu0 0.0
  %504 = vmatpush.msra.mxu0 0.0
  %505 = vmatpush.msra.mxu0 0.0
  %506 = vmatpush.msra.mxu0 0.0
  %507 = vmatpush.msra.mxu0 0.0
  %508 = vmatpush.msra.mxu0 %v491
  %509 = vmatpush.msra.mxu0 %v490
  %510 = vmatmul.f32.gmra.mxu0 %v492
  %v511 = vpop.f32.mrf.mxu0
  %v512 = vadd.f32 0.0, %v511
  %513 = vdwg.mxu0
  %v514 = vadd.f32 %v489, %v512
  %v515 = vxor.u32 %v514, 2147483648
  %v516 = vmul.f32 %v515, 1.442695
  %v517 = vpow.pop %v516
  %v518 = vadd.f32 %v517, 1.0
  %v519 = vrcp.pop %v518
  %v520 = vmul.f32 %v518, %v519
  %v521 = vsub.f32 1.0, %v520
  %v522 = vmul.f32 %v519, %v521
  %v523 = vadd.f32 %v519, %v522
  %vm524 = vweird.f32 %v518
  %vm525 = vweird.f32 %v519
  %vm526 = vmor %vm524, %vm525
  %v527 = vsel %vm526, %v519, %v523
  %v528 = vand.u32 2147483647, %v518
  %vm529 = vcmp.eq.f32.partialorder %v528, 8.507059e+37
  %v530 = vand.u32 %v518, 2147483648
  %v531 = vor.u32 1.1754944e-38, %v530
  %v532 = vsel %vm529, %v531, %v527
  %v533 = vmul.f32 1.0, %v532
  %v534 = vld [vmem:[%s7] sm:$0x1]
  %v536 = vperm.slane %v534, 0
  %537 = vrot.lane.b32.xlu0 %v536, 32
  %v538 = vpop.permute.xlu0 %537
  %v540 = vadd.f32 %v512, %v538
  %542 = vrot.lane.b32.xlu0 %v540, 96
  %v543 = vpop.permute.xlu0 %542
  %v545 = vmul.f32 %v533, %v543
  %547 = vrot.lane.b32.xlu0 %v545, 32
  %v548 = vpop.permute.xlu0 %547
  %v550 = vadd.f32 %v489, %v548
  %v551 = vtanh.pop %v550
  %v552 = vsub.f32 1.0, %v533
  %554 = vrot.lane.b32.xlu0 %v551, 112
  %v555 = vpop.permute.xlu0 %554
  %v557 = vmul.f32 %v552, %v555
  %v558 = vmul.f32 %v533, %v481
  %v559 = vadd.f32 %v557, %v558
  %561 = vrot.lane.b32.xlu0 %v559, 112
  %v562 = vpop.permute.xlu0 %561
  %s564 = scalar_lea.vmem [#allocation3], 20
  %565 = vst.msk [vmem:[%s564] sm:$0xf] %vm174, %v562
  %s566 = scalar_lea.vmem [#allocation2], 24
  %v567 = vld [vmem:[%s566] sm:$0xf]
  %v568 = vld [vmem:[%s5] sm:$0xff]
  %v569 = vld [vmem:[%s5 + $0x8] sm:$0xff]
  %v570 = vsel %vm100, %v562, 0
  %572 = vmatpush.msra.mxu0 0.0
  %573 = vmatpush.msra.mxu0 0.0
  %574 = vmatpush.msra.mxu0 0.0
  %575 = vmatpush.msra.mxu0 0.0
  %576 = vmatpush.msra.mxu0 0.0
  %577 = vmatpush.msra.mxu0 0.0
  %578 = vmatpush.msra.mxu0 0.0
  %579 = vmatpush.msra.mxu0 0.0
  %580 = vmatpush.msra.mxu0 0.0
  %581 = vmatpush.msra.mxu0 0.0
  %582 = vmatpush.msra.mxu0 0.0
  %583 = vmatpush.msra.mxu0 0.0
  %584 = vmatpush.msra.mxu0 0.0
  %585 = vmatpush.msra.mxu0 0.0
  %586 = vmatpush.msra.mxu0 %v569
  %587 = vmatpush.msra.mxu0 %v568
  %588 = vmatmul.f32.gmra.mxu0 %v570
  %v589 = vpop.f32.mrf.mxu0
  %v590 = vadd.f32 0.0, %v589
  %591 = vdwg.mxu0
  %v592 = vadd.f32 %v567, %v590
  %v593 = vxor.u32 %v592, 2147483648
  %v594 = vmul.f32 %v593, 1.442695
  %v595 = vpow.pop %v594
  %v596 = vadd.f32 %v595, 1.0
  %v597 = vrcp.pop %v596
  %v598 = vmul.f32 %v596, %v597
  %v599 = vsub.f32 1.0, %v598
  %v600 = vmul.f32 %v597, %v599
  %v601 = vadd.f32 %v597, %v600
  %vm602 = vweird.f32 %v596
  %vm603 = vweird.f32 %v597
  %vm604 = vmor %vm602, %vm603
  %v605 = vsel %vm604, %v597, %v601
  %v606 = vand.u32 2147483647, %v596
  %vm607 = vcmp.eq.f32.partialorder %v606, 8.507059e+37
  %v608 = vand.u32 %v596, 2147483648
  %v609 = vor.u32 1.1754944e-38, %v608
  %v610 = vsel %vm607, %v609, %v605
  %v611 = vmul.f32 1.0, %v610
  %v612 = vld [vmem:[%s7] sm:$0x1]
  %v614 = vperm.slane %v612, 0
  %615 = vrot.lane.b32.xlu0 %v614, 32
  %v616 = vpop.permute.xlu0 %615
  %v618 = vadd.f32 %v590, %v616
  %620 = vrot.lane.b32.xlu0 %v618, 96
  %v621 = vpop.permute.xlu0 %620
  %v623 = vmul.f32 %v611, %v621
  %625 = vrot.lane.b32.xlu0 %v623, 32
  %v626 = vpop.permute.xlu0 %625
  %v628 = vadd.f32 %v567, %v626
  %v629 = vtanh.pop %v628
  %v630 = vsub.f32 1.0, %v611
  %632 = vrot.lane.b32.xlu0 %v629, 112
  %v633 = vpop.permute.xlu0 %632
  %v635 = vmul.f32 %v630, %v633
  %v636 = vmul.f32 %v611, %v559
  %v637 = vadd.f32 %v635, %v636
  %639 = vrot.lane.b32.xlu0 %v637, 112
  %v640 = vpop.permute.xlu0 %639
  %s642 = scalar_lea.vmem [#allocation3], 24
  %643 = vst.msk [vmem:[%s642] sm:$0xf] %vm174, %v640
  %s644 = scalar_lea.vmem [#allocation2], 28
  %v645 = vld [vmem:[%s644] sm:$0xf]
  %v646 = vld [vmem:[%s5] sm:$0xff]
  %v647 = vld [vmem:[%s5 + $0x8] sm:$0xff]
  %v648 = vsel %vm100, %v640, 0
  %650 = vmatpush.msra.mxu0 0.0
  %651 = vmatpush.msra.mxu0 0.0
  %652 = vmatpush.msra.mxu0 0.0
  %653 = vmatpush.msra.mxu0 0.0
  %654 = vmatpush.msra.mxu0 0.0
  %655 = vmatpush.msra.mxu0 0.0
  %656 = vmatpush.msra.mxu0 0.0
  %657 = vmatpush.msra.mxu0 0.0
  %658 = vmatpush.msra.mxu0 0.0
  %659 = vmatpush.msra.mxu0 0.0
  %660 = vmatpush.msra.mxu0 0.0
  %661 = vmatpush.msra.mxu0 0.0
  %662 = vmatpush.msra.mxu0 0.0
  %663 = vmatpush.msra.mxu0 0.0
  %664 = vmatpush.msra.mxu0 %v647
  %665 = vmatpush.msra.mxu0 %v646
  %666 = vmatmul.f32.gmra.mxu0 %v648
  %v667 = vpop.f32.mrf.mxu0
  %v668 = vadd.f32 0.0, %v667
  %669 = vdwg.mxu0
  %v670 = vadd.f32 %v645, %v668
  %v671 = vxor.u32 %v670, 2147483648
  %v672 = vmul.f32 %v671, 1.442695
  %v673 = vpow.pop %v672
  %v674 = vadd.f32 %v673, 1.0
  %v675 = vrcp.pop %v674
  %v676 = vmul.f32 %v674, %v675
  %v677 = vsub.f32 1.0, %v676
  %v678 = vmul.f32 %v675, %v677
  %v679 = vadd.f32 %v675, %v678
  %vm680 = vweird.f32 %v674
  %vm681 = vweird.f32 %v675
  %vm682 = vmor %vm680, %vm681
  %v683 = vsel %vm682, %v675, %v679
  %v684 = vand.u32 2147483647, %v674
  %vm685 = vcmp.eq.f32.partialorder %v684, 8.507059e+37
  %v686 = vand.u32 %v674, 2147483648
  %v687 = vor.u32 1.1754944e-38, %v686
  %v688 = vsel %vm685, %v687, %v683
  %v689 = vmul.f32 1.0, %v688
  %v690 = vld [vmem:[%s7] sm:$0x1]
  %v692 = vperm.slane %v690, 0
  %693 = vrot.lane.b32.xlu0 %v692, 32
  %v694 = vpop.permute.xlu0 %693
  %v696 = vadd.f32 %v668, %v694
  %698 = vrot.lane.b32.xlu0 %v696, 96
  %v699 = vpop.permute.xlu0 %698
  %v701 = vmul.f32 %v689, %v699
  %703 = vrot.lane.b32.xlu0 %v701, 32
  %v704 = vpop.permute.xlu0 %703
  %v706 = vadd.f32 %v645, %v704
  %v707 = vtanh.pop %v706
  %v708 = vsub.f32 1.0, %v689
  %710 = vrot.lane.b32.xlu0 %v707, 112
  %v711 = vpop.permute.xlu0 %710
  %v713 = vmul.f32 %v708, %v711
  %v714 = vmul.f32 %v689, %v637
  %v715 = vadd.f32 %v713, %v714
  %717 = vrot.lane.b32.xlu0 %v715, 112
  %v718 = vpop.permute.xlu0 %717
  %s720 = scalar_lea.vmem [#allocation3], 28
  %721 = vst.msk [vmem:[%s720] sm:$0xf] %vm174, %v718
  %v722 = vld [vmem:[#allocation3] sm:$0xf]
  %v723 = vld [vmem:[#allocation3 + $0x4] sm:$0xf]
  %v724 = vld [vmem:[#allocation3 + $0x8] sm:$0xf]
  %v725 = vld [vmem:[#allocation3 + $0xc] sm:$0xf]
  %v726 = vld [vmem:[#allocation3 + $0x10] sm:$0xf]
  %v727 = vld [vmem:[#allocation3 + $0x14] sm:$0xf]
  %v728 = vld [vmem:[#allocation3 + $0x18] sm:$0xf]
  %v729 = vld [vmem:[#allocation3 + $0x1c] sm:$0xf]
  %v730 = vld [vmem:[%s1] sm:$0xf]
  %v731 = vmul.f32 %v722, %v730
  %v732 = vmul.f32 %v723, %v730
  %v733 = vmul.f32 %v724, %v730
  %v734 = vmul.f32 %v725, %v730
  %v735 = vmul.f32 %v726, %v730
  %v736 = vmul.f32 %v727, %v730
  %v737 = vmul.f32 %v728, %v730
  %v738 = vmul.f32 %v729, %v730
  %v739 = vsel %vm174, %v731, 0.0
  %740 = vadd.xlane.f32.xlu0 %v739
  %v741 = vpop.xlane.xlu0 %740
  %v742 = vsel %vm174, %v732, 0.0
  %743 = vadd.xlane.f32.xlu0 %v742
  %v744 = vpop.xlane.xlu0 %743
  %v745 = vsel %vm174, %v733, 0.0
  %746 = vadd.xlane.f32.xlu0 %v745
  %v747 = vpop.xlane.xlu0 %746
  %v748 = vsel %vm174, %v734, 0.0
  %749 = vadd.xlane.f32.xlu0 %v748
  %v750 = vpop.xlane.xlu0 %749
  %v751 = vsel %vm174, %v735, 0.0
  %752 = vadd.xlane.f32.xlu0 %v751
  %v753 = vpop.xlane.xlu0 %752
  %v754 = vsel %vm174, %v736, 0.0
  %755 = vadd.xlane.f32.xlu0 %v754
  %v756 = vpop.xlane.xlu0 %755
  %v757 = vsel %vm174, %v737, 0.0
  %758 = vadd.xlane.f32.xlu0 %v757
  %v759 = vpop.xlane.xlu0 %758
  %v760 = vsel %vm174, %v738, 0.0
  %761 = vadd.xlane.f32.xlu0 %v760
  %v762 = vpop.xlane.xlu0 %761
  %v763 = vld [vmem:[%s3] sm:$0x1]
  %vm764 = vcmp.gt.s32.totalorder %v763, 1
  %v765 = vsel %vm764, %v763, 1
  %v766 = vlaneseq
  %v767 = vshrl.u32 %v766, 7
  %v768 = vperm.slane %v765, 0
  %vm769 = vcmp.lt.s32.totalorder %v767, %v768
  %v778 = vlaneseq
  %v779 = vand.u32 %v778, 127
  %v780 = vperm.slane %v741, %v779
  %v781 = vperm.slane %v744, %v779
  %v782 = vperm.slane %v747, %v779
  %v783 = vperm.slane %v750, %v779
  %v784 = vperm.slane %v753, %v779
  %v785 = vperm.slane %v756, %v779
  %v786 = vperm.slane %v759, %v779
  %v787 = vperm.slane %v762, %v779
  %vm788 = vcmask 1041409
  %v789 = vsel %vm788, %v781, %v780
  %vm790 = vcmask 1042434
  %v791 = vsel %vm790, %v782, %v789
  %vm792 = vcmask 1043459
  %v793 = vsel %vm792, %v783, %v791
  %vm794 = vcmask 1044484
  %v795 = vsel %vm794, %v784, %v793
  %vm796 = vcmask 1045509
  %v797 = vsel %vm796, %v785, %v795
  %vm798 = vcmask 1046534
  %v799 = vsel %vm798, %v786, %v797
  %vm800 = vcmask 1047559
  %v801 = vsel %vm800, %v787, %v799
  %v803 = vsel %vm769, %v801, -1e+30
  %vm804 = vcmask 31744
  %v805 = vsel %vm804, %v803, -inf
  %v806 = vrot.slane %v805, 4
  %v807 = vmax.f32 %v805, %v806
  %v808 = vrot.slane %v807, 2
  %v809 = vmax.f32 %v807, %v808
  %v810 = vrot.slane %v809, 1
  %v811 = vmax.f32 %v809, %v810
  %v812 = vsub.f32 %v803, %v811
  %v813 = vmul.f32 %v812, 1.442695
  %v814 = vpow.pop %v813
  %v815 = vsel %vm804, %v814, 0.0
  %v816 = vrot.slane %v815, 4
  %v817 = vadd.f32 %v815, %v816
  %v818 = vrot.slane %v817, 2
  %v819 = vadd.f32 %v817, %v818
  %v820 = vrot.slane %v819, 1
  %v821 = vadd.f32 %v819, %v820
  %v822 = vrcp.pop %v821
  %v823 = vmul.f32 %v821, %v822
  %v824 = vsub.f32 1.0, %v823
  %v825 = vmul.f32 %v822, %v824
  %v826 = vadd.f32 %v822, %v825
  %vm827 = vweird.f32 %v821
  %vm828 = vweird.f32 %v822
  %vm829 = vmor %vm827, %vm828
  %v830 = vsel %vm829, %v822, %v826
  %v831 = vand.u32 2147483647, %v821
  %vm832 = vcmp.eq.f32.partialorder %v831, 8.507059e+37
  %v833 = vand.u32 %v821, 2147483648
  %v834 = vor.u32 1.1754944e-38, %v833
  %v835 = vsel %vm832, %v834, %v830
  %v836 = vmul.f32 %v814, %v835
  %v837 = vperm.slane %v836, 0
  %v838 = vlaneseq
  %v839 = vshrl.u32 %v838, 7
  %841 = vset.pattern.permute.xlu0 %v839
  %842 = vperm.xlu0 %841, %v837
  %v843 = vpop.permute.xlu0 %842
  %v844 = vperm.slane %v836, 1
  %v845 = vlaneseq
  %v846 = vshrl.u32 %v845, 7
  %848 = vset.pattern.permute.xlu0 %v846
  %849 = vperm.xlu0 %848, %v844
  %v850 = vpop.permute.xlu0 %849
  %v851 = vperm.slane %v836, 2
  %v852 = vlaneseq
  %v853 = vshrl.u32 %v852, 7
  %855 = vset.pattern.permute.xlu0 %v853
  %856 = vperm.xlu0 %855, %v851
  %v857 = vpop.permute.xlu0 %856
  %v858 = vperm.slane %v836, 3
  %v859 = vlaneseq
  %v860 = vshrl.u32 %v859, 7
  %862 = vset.pattern.permute.xlu0 %v860
  %863 = vperm.xlu0 %862, %v858
  %v864 = vpop.permute.xlu0 %863
  %v865 = vperm.slane %v836, 4
  %v866 = vlaneseq
  %v867 = vshrl.u32 %v866, 7
  %869 = vset.pattern.permute.xlu0 %v867
  %870 = vperm.xlu0 %869, %v865
  %v871 = vpop.permute.xlu0 %870
  %v872 = vperm.slane %v836, 5
  %v873 = vlaneseq
  %v874 = vshrl.u32 %v873, 7
  %876 = vset.pattern.permute.xlu0 %v874
  %877 = vperm.xlu0 %876, %v872
  %v878 = vpop.permute.xlu0 %877
  %v879 = vperm.slane %v836, 6
  %v880 = vlaneseq
  %v881 = vshrl.u32 %v880, 7
  %883 = vset.pattern.permute.xlu0 %v881
  %884 = vperm.xlu0 %883, %v879
  %v885 = vpop.permute.xlu0 %884
  %v886 = vperm.slane %v836, 7
  %v887 = vlaneseq
  %v888 = vshrl.u32 %v887, 7
  %890 = vset.pattern.permute.xlu0 %v888
  %891 = vperm.xlu0 %890, %v886
  %v892 = vpop.permute.xlu0 %891
  %v893 = vmul.f32 %v843, %v722
  %v894 = vmul.f32 %v850, %v723
  %v895 = vmul.f32 %v857, %v724
  %v896 = vmul.f32 %v864, %v725
  %v897 = vmul.f32 %v871, %v726
  %v898 = vmul.f32 %v878, %v727
  %v899 = vmul.f32 %v885, %v728
  %v900 = vmul.f32 %v892, %v729
  %v901 = vsel %vm174, %v893, 0.0
  %v902 = vsel %vm174, %v894, 0.0
  %v903 = vadd.f32 %v901, %v902
  %v904 = vsel %vm174, %v895, 0.0
  %v905 = vadd.f32 %v903, %v904
  %v906 = vsel %vm174, %v896, 0.0
  %v907 = vadd.f32 %v905, %v906
  %v908 = vsel %vm174, %v897, 0.0
  %v909 = vadd.f32 %v907, %v908
  %v910 = vsel %vm174, %v898, 0.0
  %v911 = vadd.f32 %v909, %v910
  %v912 = vsel %vm174, %v899, 0.0
  %v913 = vadd.f32 %v911, %v912
  %v914 = vsel %vm174, %v900, 0.0
  %v915 = vadd.f32 %v913, %v914
  %v916 = vld [vmem:[%s0] sm:$0xf]
  %v917 = vld [vmem:[%s8] sm:$0xff]
  %v918 = vld [vmem:[%s8 + $0x8] sm:$0xff]
  %v919 = vld [vmem:[%s9] sm:$0xff]
  %v920 = vld [vmem:[%s9 + $0x8] sm:$0xff]
  %v922 = vsel %vm100, %v730, 0
  %924 = vmatpush.msra.mxu0 0.0
  %925 = vmatpush.msra.mxu0 0.0
  %926 = vmatpush.msra.mxu0 0.0
  %927 = vmatpush.msra.mxu0 0.0
  %928 = vmatpush.msra.mxu0 0.0
  %929 = vmatpush.msra.mxu0 0.0
  %930 = vmatpush.msra.mxu0 0.0
  %931 = vmatpush.msra.mxu0 0.0
  %932 = vmatpush.msra.mxu0 0.0
  %933 = vmatpush.msra.mxu0 0.0
  %934 = vmatpush.msra.mxu0 0.0
  %935 = vmatpush.msra.mxu0 0.0
  %936 = vmatpush.msra.mxu0 0.0
  %937 = vmatpush.msra.mxu0 0.0
  %938 = vmatpush.msra.mxu0 %v920
  %939 = vmatpush.msra.mxu0 %v919
  %940 = vmatmul.f32.gmra.mxu0 %v922
  %v941 = vpop.f32.mrf.mxu0
  %v942 = vadd.f32 0.0, %v941
  %943 = vdwg.mxu0
  %v945 = vsel %vm100, %v916, 0
  %947 = vmatpush.msra.mxu0 0.0
  %948 = vmatpush.msra.mxu0 0.0
  %949 = vmatpush.msra.mxu0 0.0
  %950 = vmatpush.msra.mxu0 0.0
  %951 = vmatpush.msra.mxu0 0.0
  %952 = vmatpush.msra.mxu0 0.0
  %953 = vmatpush.msra.mxu0 0.0
  %954 = vmatpush.msra.mxu0 0.0
  %955 = vmatpush.msra.mxu0 0.0
  %956 = vmatpush.msra.mxu0 0.0
  %957 = vmatpush.msra.mxu0 0.0
  %958 = vmatpush.msra.mxu0 0.0
  %959 = vmatpush.msra.mxu0 0.0
  %960 = vmatpush.msra.mxu0 0.0
  %961 = vmatpush.msra.mxu0 %v918
  %962 = vmatpush.msra.mxu0 %v917
  %963 = vmatmul.f32.gmra.mxu0 %v945
  %v964 = vpop.f32.mrf.mxu0
  %v965 = vadd.f32 %v942, %v964
  %966 = vdwg.mxu0
  %v967 = vld [vmem:[%s10] sm:$0xff]
  %v968 = vld [vmem:[%s10 + $0x8] sm:$0xff]
  %v970 = vsel %vm100, %v915, 0
  %972 = vmatpush.msra.mxu0 0.0
  %973 = vmatpush.msra.mxu0 0.0
  %974 = vmatpush.msra.mxu0 0.0
  %975 = vmatpush.msra.mxu0 0.0
  %976 = vmatpush.msra.mxu0 0.0
  %977 = vmatpush.msra.mxu0 0.0
  %978 = vmatpush.msra.mxu0 0.0
  %979 = vmatpush.msra.mxu0 0.0
  %980 = vmatpush.msra.mxu0 0.0
  %981 = vmatpush.msra.mxu0 0.0
  %982 = vmatpush.msra.mxu0 0.0
  %983 = vmatpush.msra.mxu0 0.0
  %984 = vmatpush.msra.mxu0 0.0
  %985 = vmatpush.msra.mxu0 0.0
  %986 = vmatpush.msra.mxu0 %v968
  %987 = vmatpush.msra.mxu0 %v967
  %988 = vmatmul.f32.gmra.mxu0 %v970
  %v989 = vpop.f32.mrf.mxu0
  %v990 = vadd.f32 0.0, %v989
  %991 = vdwg.mxu0
  %v992 = vadd.f32 %v965, %v990
  %v993 = vld [vmem:[%s11] sm:$0x1]
  %v995 = vperm.slane %v993, 0
  %v997 = vadd.f32 %v992, %v995
  %v998 = vmax.f32 %v997, 0.0
  %v999 = vld [vmem:[%s12] sm:$0xff]
  %v1000 = vld [vmem:[%s12 + $0x8] sm:$0xff]
  %v1001 = vld [vmem:[%s12 + $0x10] sm:$0xff]
  %v1002 = vld [vmem:[%s12 + $0x18] sm:$0xff]
  %v1003 = vld [vmem:[%s13] sm:$0x1]
  %v1005 = vperm.slane %v1003, 0
  %vm1007 = vcmask 261120
  %v1009 = vsel %vm1007, %v998, 0
  %1011 = vmatpush.msra.mxu0 0.0
  %1012 = vmatpush.msra.mxu0 0.0
  %1013 = vmatpush.msra.mxu0 0.0
  %1014 = vmatpush.msra.mxu0 0.0
  %1015 = vmatpush.msra.mxu0 0.0
  %1016 = vmatpush.msra.mxu0 0.0
  %1017 = vmatpush.msra.mxu0 0.0
  %1018 = vmatpush.msra.mxu0 0.0
  %1019 = vmatpush.msra.mxu0 0.0
  %1020 = vmatpush.msra.mxu0 0.0
  %1021 = vmatpush.msra.mxu0 0.0
  %1022 = vmatpush.msra.mxu0 0.0
  %1023 = vmatpush.msra.mxu0 %v1002
  %1024 = vmatpush.msra.mxu0 %v1001
  %1025 = vmatpush.msra.mxu0 %v1000
  %1026 = vmatpush.msra.mxu0 %v999
  %1027 = vmatmul.f32.gmra.mxu0 %v1009
  %v1028 = vpop.f32.mrf.mxu0
  %v1029 = vadd.f32 %v1005, %v1028
  %1030 = vdwg.mxu0
  %v1031 = vmax.f32 %v1029, 0.0
  %v1032 = vld [vmem:[%s14] sm:$0xff]
  %v1033 = vld [vmem:[%s14 + $0x8] sm:$0xff]
  %v1034 = vld [vmem:[#allocation4] sm:$0x1]
  %v1036 = vperm.slane %v1034, 0
  %v1039 = vsel %vm100, %v1031, 0
  %1041 = vmatpush.msra.mxu0 0.0
  %1042 = vmatpush.msra.mxu0 0.0
  %1043 = vmatpush.msra.mxu0 0.0
  %1044 = vmatpush.msra.mxu0 0.0
  %1045 = vmatpush.msra.mxu0 0.0
  %1046 = vmatpush.msra.mxu0 0.0
  %1047 = vmatpush.msra.mxu0 0.0
  %1048 = vmatpush.msra.mxu0 0.0
  %1049 = vmatpush.msra.mxu0 0.0
  %1050 = vmatpush.msra.mxu0 0.0
  %1051 = vmatpush.msra.mxu0 0.0
  %1052 = vmatpush.msra.mxu0 0.0
  %1053 = vmatpush.msra.mxu0 0.0
  %1054 = vmatpush.msra.mxu0 0.0
  %1055 = vmatpush.msra.mxu0 %v1033
  %1056 = vmatpush.msra.mxu0 %v1032
  %1057 = vmatmul.f32.gmra.mxu0 %v1039
  %v1058 = vpop.f32.mrf.mxu0
  %v1059 = vadd.f32 %v1036, %v1058
  %1060 = vdwg.mxu0
  %v1061 = vxor.u32 %v1059, 2147483648
  %v1062 = vmul.f32 %v1061, 1.442695
  %v1063 = vpow.pop %v1062
  %v1064 = vadd.f32 %v1063, 1.0
  %v1065 = vrcp.pop %v1064
  %v1066 = vmul.f32 %v1064, %v1065
  %v1067 = vsub.f32 1.0, %v1066
  %v1068 = vmul.f32 %v1065, %v1067
  %v1069 = vadd.f32 %v1065, %v1068
  %vm1070 = vweird.f32 %v1064
  %vm1071 = vweird.f32 %v1065
  %vm1072 = vmor %vm1070, %vm1071
  %v1073 = vsel %vm1072, %v1065, %v1069
  %v1074 = vand.u32 2147483647, %v1064
  %vm1075 = vcmp.eq.f32.partialorder %v1074, 8.507059e+37
  %v1076 = vand.u32 %v1064, 2147483648
  %v1077 = vor.u32 1.1754944e-38, %v1076
  %v1078 = vsel %vm1075, %v1077, %v1073
  %v1079 = vmul.f32 1.0, %v1078
  %vm1080 = vcmask 3072
  %1081 = vst.msk [vmem:[%s16] sm:$0xf] %vm1080, %v1079
  // Predicated region
  $region73: #{dien_forward.1} parent=0 // pred_check
    _
  $region74: #{dien_forward.1} parent=0 // pred_check_branch
    %1083 = sbr.rel (0) target = $region76
  $region75: #{dien_forward.1} parent=0 // pred_region
    _
  $region76: #{dien_forward.1} parent=0 // pred_fallthru
    _
  // Predicated region
  $region77: #{dien_forward.1} parent=0 // pred_check
    _
  $region78: #{dien_forward.1} parent=0 // pred_check_branch
    %1085 = sbr.rel (0) target = $region80
  $region79: #{dien_forward.1} parent=0 // pred_region
    _
  $region80: #{dien_forward.1} parent=0 // pred_fallthru
    _

</llo_original>
